<compile_context>
chip_gen: v6e
topology: v6e:2x2x1
jax: 0.10.0
libtpu: 0.0.40
codegen_flags: <defaults>
</compile_context>

<pallas_src>
import functools

import jax
import jax.numpy as jnp
from jax.experimental import pallas as pl
from jax.experimental.pallas import tpu as pltpu

EPS = 1e-5
CENTER_TAP = 4  # (ky, kx) = (1, 1), zero offset, needs no mask


# ---------------------------------------------------------------------------
# In-kernel building blocks (channel-major: rows = channels, lanes = N*H*W)
# ---------------------------------------------------------------------------
def _im2col_taps(x, tapmask_ref, w_spatial):
    """Build the (9*C, M) im2col-in-channels operand.

    x: (C, M) f32, M = N*H*W flattened into lanes.
    tapmask_ref: (9, 1, M) precomputed combined boundary masks (row 4 is all-ones).
    Each tap is a circular lane roll (XLU) with out-of-bounds positions masked to 0;
    the 9 masked taps are stacked along the sublane axis (C is a multiple of 8, so the
    concatenation offsets are (8,128)-tile aligned -> no relayout).
    """
    m_total = x.shape[1]
    parts = []
    for ky in range(3):
        for kx in range(3):
            tap = ky * 3 + kx
            off = (ky - 1) * w_spatial + (kx - 1)
            # shifted[q] = x[q + off] (circular); boundary masks kill wraparound taps.
            shifted = x if off == 0 else pltpu.roll(x, shift=(-off) % m_total, axis=1)
            parts.append(shifted if tap == CENTER_TAP else shifted * tapmask_ref[tap])
    return jnp.concatenate(parts, axis=0)


def _bn_relu(x, g_ref, b_ref):
    """BatchNorm2d (training mode: batch stats, biased var) + ReLU.

    Single f32 pass: sum and sum-of-squares lane reductions, then one fused per-channel
    scale/shift so the elementwise apply is one mul + one add (+ ReLU max).
    """
    inv_m = 1.0 / x.shape[1]
    s1 = jnp.sum(x, axis=1, keepdims=True)          # (C, 1)
    s2 = jnp.sum(x * x, axis=1, keepdims=True)      # (C, 1)
    mu = s1 * inv_m
    var = s2 * inv_m - mu * mu                      # biased variance (f32 accumulation)
    scale = g_ref[...] * jax.lax.rsqrt(var + EPS)
    shift = b_ref[...] - mu * scale
    return jnp.maximum(x * scale + shift, 0.0)


def _fused_stage(x, tapmask_ref, wf_ref, b_ref, g_ref, be_ref, w_spatial):
    """Depthwise3x3 + Pointwise1x1 as ONE MXU matmul over the im2col operand, then BN+ReLU."""
    xi = _im2col_taps(x, tapmask_ref, w_spatial)                       # (9*Cin, M)
    y = jnp.dot(wf_ref[...], xi, preferred_element_type=jnp.float32)   # (Cout, M) on MXU
    y = y + b_ref[...]
    return _bn_relu(y, g_ref, be_ref)


# ---------------------------------------------------------------------------
# Fused kernel: whole head in VMEM (tiny footprint in channel-major layout)
# ---------------------------------------------------------------------------
def optimized_head_kernel(
    w_spatial,
    x_ref, tapmask_ref,
    w1_ref, b1_ref, g1_ref, be1_ref,
    w2_ref, b2_ref, g2_ref, be2_ref,
    w3_ref, b3_ref,
    o_ref,
):
    x = x_ref[...]
    # stage 1: (dw3x3 ∘ pw1x1) fused matmul (C1, 9*Cin) @ (9*Cin, M) -> BN -> ReLU
    y = _fused_stage(x, tapmask_ref, w1_ref, b1_ref, g1_ref, be1_ref, w_spatial)
    # stage 2: (C2, 9*C1) @ (9*C1, M)
    y = _fused_stage(y, tapmask_ref, w2_ref, b2_ref, g2_ref, be2_ref, w_spatial)
    # stage 3: final 1x1 conv, lane-dense (C_OUT, M) output
    o_ref[...] = (jnp.dot(w3_ref[...], y, preferred_element_type=jnp.float32)
                  + b3_ref[...]).astype(o_ref.dtype)


# ---------------------------------------------------------------------------
# Wrapper: layout/param prep (cheap, parameter/lead-dim only) + pallas_call
# ---------------------------------------------------------------------------
def _fuse_dw_pw(dw_w, pw_w):
    """Fold per-tap depthwise weights into the pointwise weights.

    dw_w: (3, 3, Cin);  pw_w: (Cout, Cin)  ->  (Cout, 9*Cin) with K index = tap*Cin + c,
    matching the in-kernel tap-major im2col stacking order.
    """
    dw9 = dw_w.reshape(9, -1)                            # (9, Cin)
    wf = pw_w[:, None, :] * dw9[None, :, :]              # (Cout, 9, Cin)
    return wf.reshape(pw_w.shape[0], -1)                 # (Cout, 9*Cin)


def optimized_head(x_nchw, p):
    n, cin, h, w = x_nchw.shape
    hw = h * w
    m = n * hw
    cout = p["w3"].shape[0]

    # NCHW -> channel-major (C, N*H*W). Leading-dim transpose only (lane dim untouched).
    # TODO(synk): at production sizes express this via a grid-over-N BlockSpec instead of
    # a wrapper transpose (extra HBM pass), and tile M with halos + two-pass BN stats.
    x_cm = jnp.transpose(x_nchw.astype(jnp.float32).reshape(n, cin, hw),
                         (1, 0, 2)).reshape(cin, m)

    # Combined per-tap boundary masks (9, 1, M) for the pad-1 3x3 depthwise, built once
    # and shared by both stages (center tap row is all-ones and skipped in-kernel).
    pos = jnp.arange(m, dtype=jnp.int32) % hw
    yy, xx = pos // w, pos % w
    my = [yy >= 1, jnp.ones((m,), bool), yy <= h - 2]
    mx = [xx >= 1, jnp.ones((m,), bool), xx <= w - 2]
    tapmask = jnp.stack([(my[ky] & mx[kx]).astype(jnp.float32)
                         for ky in range(3) for kx in range(3)]).reshape(9, 1, m)

    # Parameter precomputes: depthwise taps folded into pointwise weights (one MXU matmul
    # per stage, K = 9*Cin) and depthwise biases folded into the pointwise biases (exact).
    hi = jax.lax.Precision.HIGHEST
    w1f = _fuse_dw_pw(p["dw1_w"], p["pw1_w"])                               # (C1, 9*Cin)
    w2f = _fuse_dw_pw(p["dw2_w"], p["pw2_w"])                               # (C2, 9*C1)
    pb1 = p["pw1_b"] + jnp.dot(p["pw1_w"], p["dw1_b"], precision=hi)        # (C1, 1)
    pb2 = p["pw2_b"] + jnp.dot(p["pw2_w"], p["dw2_b"], precision=hi)        # (C2, 1)

    args = (
        x_cm, tapmask,
        w1f, pb1, p["bn1_g"], p["bn1_b"],
        w2f, pb2, p["bn2_g"], p["bn2_b"],
        p["w3"], p["b3"],
    )
    vmem = lambda: pl.BlockSpec(memory_space=pltpu.MemorySpace.VMEM)
    # Single fused grid point: every operand is a few (C, 512) / (C, 9C) f32 tiles, far
    # under every generation's VMEM limit (incl. v7x's 64 MiB).
    out_cm = pl.pallas_call(
        functools.partial(optimized_head_kernel, w),
        out_shape=jax.ShapeDtypeStruct((cout, m), jnp.float32),
        in_specs=[vmem() for _ in args],
        out_specs=vmem(),
    )(*args)

    # (C_OUT, N*H*W) -> NCHW. Leading-dim transpose only.
    return jnp.transpose(out_cm.reshape(cout, n, h, w), (1, 0, 2, 3))


# ---------------------------------------------------------------------------
# Deterministic parameter init (kernel-friendly layouts)
# ---------------------------------------------------------------------------
def init_params(key, cin, cout):
    c1, c2 = cin // 2, cin // 4
    ks = jax.random.split(key, 14)
    rn = lambda k, s, scale=0.1: scale * jax.random.normal(k, s, jnp.float32)
    return dict(
        dw1_w=rn(ks[0], (3, 3, cin)),    dw1_b=rn(ks[1], (cin, 1)),
        pw1_w=rn(ks[2], (c1, cin)),      pw1_b=rn(ks[3], (c1, 1)),
        bn1_g=1.0 + rn(ks[4], (c1, 1)),  bn1_b=rn(ks[5], (c1, 1)),
        dw2_w=rn(ks[6], (3, 3, c1)),     dw2_b=rn(ks[7], (c1, 1)),
        pw2_w=rn(ks[8], (c2, c1)),       pw2_b=rn(ks[9], (c2, 1)),
        bn2_g=1.0 + rn(ks[10], (c2, 1)), bn2_b=rn(ks[11], (c2, 1)),
        w3=rn(ks[12], (cout, c2)),       b3=rn(ks[13], (cout, 1)),
    )


# ---------------------------------------------------------------------------
# Pure-JAX reference (same math as the PyTorch module, outside Pallas)
# ---------------------------------------------------------------------------
def reference(x_nchw, p):
    x = x_nchw.astype(jnp.float32)
    _, _, h, w = x.shape

    def dw(x, wt, b):
        xp = jnp.pad(x, ((0, 0), (0, 0), (1, 1), (1, 1)))
        acc = 0.0
        for ky in range(3):
            for kx in range(3):
                acc = acc + xp[:, :, ky:ky + h, kx:kx + w] * wt[ky, kx][None, :, None, None]
        return acc + b.reshape(1, -1, 1, 1)

    def pw(x, wt, b):
        return jnp.einsum("oc,nchw->nohw", wt, x,
                          precision=jax.lax.Precision.HIGHEST) + b.reshape(1, -1, 1, 1)

    def bn_relu(x, g, be):
        mu = jnp.mean(x, axis=(0, 2, 3), keepdims=True)
        var = jnp.mean((x - mu) ** 2, axis=(0, 2, 3), keepdims=True)
        xh = (x - mu) * jax.lax.rsqrt(var + EPS)
        return jnp.maximum(xh * g.reshape(1, -1, 1, 1) + be.reshape(1, -1, 1, 1), 0.0)

    y = bn_relu(pw(dw(x, p["dw1_w"], p["dw1_b"]), p["pw1_w"], p["pw1_b"]),
                p["bn1_g"], p["bn1_b"])
    y = bn_relu(pw(dw(y, p["dw2_w"], p["dw2_b"]), p["pw2_w"], p["pw2_b"]),
                p["bn2_g"], p["bn2_b"])
    return pw(y, p["w3"], p["b3"])


if __name__ == "__main__":
    N, C_IN, H, W = 2, 16, 16, 16
    C_OUT = 4

    key = jax.random.PRNGKey(0)
    kx, kp = jax.random.split(key)
    x = jax.random.normal(kx, (N, C_IN, H, W), jnp.float32)   # PyTorch-style NCHW input
    params = init_params(kp, C_IN, C_OUT)

    out = jax.jit(optimized_head)(x, params)
    out = jax.block_until_ready(out)

    assert out.shape == (N, C_OUT, H, W), out.shape
    assert bool(jnp.all(jnp.isfinite(out)))

    ref = reference(x, params)
    assert bool(jnp.allclose(out, ref, atol=2e-2, rtol=2e-2)), \
        float(jnp.max(jnp.abs(out - ref)))

    print("KERNEL_OK")
</pallas_src>

<mosaic_0001>
module attributes {stable_mosaic.version = 11 : i64} {
  func.func @optimized_head_kernel(%arg0: memref<16x512xf32, #tpu.memory_space<vmem>>, %arg1: memref<9x1x512xf32, #tpu.memory_space<vmem>>, %arg2: memref<8x144xf32, #tpu.memory_space<vmem>>, %arg3: memref<8x1xf32, #tpu.memory_space<vmem>>, %arg4: memref<8x1xf32, #tpu.memory_space<vmem>>, %arg5: memref<8x1xf32, #tpu.memory_space<vmem>>, %arg6: memref<4x72xf32, #tpu.memory_space<vmem>>, %arg7: memref<4x1xf32, #tpu.memory_space<vmem>>, %arg8: memref<4x1xf32, #tpu.memory_space<vmem>>, %arg9: memref<4x1xf32, #tpu.memory_space<vmem>>, %arg10: memref<4x4xf32, #tpu.memory_space<vmem>>, %arg11: memref<4x1xf32, #tpu.memory_space<vmem>>, %arg12: memref<4x512xf32, #tpu.memory_space<vmem>>) attributes {dimension_semantics = [], scalar_prefetch = 0 : i64, scratch_operands = 0 : i64, tpu.core_type = #tpu.core_type<tc>} {
    %c0 = arith.constant 0 : index
    %c0_0 = arith.constant 0 : index
    %0 = vector.load %arg0[%c0, %c0_0] : memref<16x512xf32, #tpu.memory_space<vmem>>, vector<16x512xf32>
    %c17_i32 = arith.constant 17 : i32
    %1 = tpu.dynamic_rotate %0 by %c17_i32 dim 1 : vector<16x512xf32>, i32 -> vector<16x512xf32>
    %c0_1 = arith.constant 0 : index
    %c0_2 = arith.constant 0 : index
    %c0_3 = arith.constant 0 : index
    %2 = vector.load %arg1[%c0_1, %c0_2, %c0_3] : memref<9x1x512xf32, #tpu.memory_space<vmem>>, vector<1x1x512xf32>
    %3 = vector.shape_cast %2 : vector<1x1x512xf32> to vector<1x512xf32>
    %4 = vector.broadcast %3 : vector<1x512xf32> to vector<16x512xf32>
    %5 = arith.mulf %1, %4 : vector<16x512xf32>
    %c16_i32 = arith.constant 16 : i32
    %6 = tpu.dynamic_rotate %0 by %c16_i32 dim 1 : vector<16x512xf32>, i32 -> vector<16x512xf32>
    %c1 = arith.constant 1 : index
    %c0_4 = arith.constant 0 : index
    %c0_5 = arith.constant 0 : index
    %7 = vector.load %arg1[%c1, %c0_4, %c0_5] : memref<9x1x512xf32, #tpu.memory_space<vmem>>, vector<1x1x512xf32>
    %8 = vector.shape_cast %7 : vector<1x1x512xf32> to vector<1x512xf32>
    %9 = vector.broadcast %8 : vector<1x512xf32> to vector<16x512xf32>
    %10 = arith.mulf %6, %9 : vector<16x512xf32>
    %c15_i32 = arith.constant 15 : i32
    %11 = tpu.dynamic_rotate %0 by %c15_i32 dim 1 : vector<16x512xf32>, i32 -> vector<16x512xf32>
    %c2 = arith.constant 2 : index
    %c0_6 = arith.constant 0 : index
    %c0_7 = arith.constant 0 : index
    %12 = vector.load %arg1[%c2, %c0_6, %c0_7] : memref<9x1x512xf32, #tpu.memory_space<vmem>>, vector<1x1x512xf32>
    %13 = vector.shape_cast %12 : vector<1x1x512xf32> to vector<1x512xf32>
    %14 = vector.broadcast %13 : vector<1x512xf32> to vector<16x512xf32>
    %15 = arith.mulf %11, %14 : vector<16x512xf32>
    %c1_i32 = arith.constant 1 : i32
    %16 = tpu.dynamic_rotate %0 by %c1_i32 dim 1 : vector<16x512xf32>, i32 -> vector<16x512xf32>
    %c3 = arith.constant 3 : index
    %c0_8 = arith.constant 0 : index
    %c0_9 = arith.constant 0 : index
    %17 = vector.load %arg1[%c3, %c0_8, %c0_9] : memref<9x1x512xf32, #tpu.memory_space<vmem>>, vector<1x1x512xf32>
    %18 = vector.shape_cast %17 : vector<1x1x512xf32> to vector<1x512xf32>
    %19 = vector.broadcast %18 : vector<1x512xf32> to vector<16x512xf32>
    %20 = arith.mulf %16, %19 : vector<16x512xf32>
    %c511_i32 = arith.constant 511 : i32
    %21 = tpu.dynamic_rotate %0 by %c511_i32 dim 1 : vector<16x512xf32>, i32 -> vector<16x512xf32>
    %c5 = arith.constant 5 : index
    %c0_10 = arith.constant 0 : index
    %c0_11 = arith.constant 0 : index
    %22 = vector.load %arg1[%c5, %c0_10, %c0_11] : memref<9x1x512xf32, #tpu.memory_space<vmem>>, vector<1x1x512xf32>
    %23 = vector.shape_cast %22 : vector<1x1x512xf32> to vector<1x512xf32>
    %24 = vector.broadcast %23 : vector<1x512xf32> to vector<16x512xf32>
    %25 = arith.mulf %21, %24 : vector<16x512xf32>
    %c497_i32 = arith.constant 497 : i32
    %26 = tpu.dynamic_rotate %0 by %c497_i32 dim 1 : vector<16x512xf32>, i32 -> vector<16x512xf32>
    %c6 = arith.constant 6 : index
    %c0_12 = arith.constant 0 : index
    %c0_13 = arith.constant 0 : index
    %27 = vector.load %arg1[%c6, %c0_12, %c0_13] : memref<9x1x512xf32, #tpu.memory_space<vmem>>, vector<1x1x512xf32>
    %28 = vector.shape_cast %27 : vector<1x1x512xf32> to vector<1x512xf32>
    %29 = vector.broadcast %28 : vector<1x512xf32> to vector<16x512xf32>
    %30 = arith.mulf %26, %29 : vector<16x512xf32>
    %c496_i32 = arith.constant 496 : i32
    %31 = tpu.dynamic_rotate %0 by %c496_i32 dim 1 : vector<16x512xf32>, i32 -> vector<16x512xf32>
    %c7 = arith.constant 7 : index
    %c0_14 = arith.constant 0 : index
    %c0_15 = arith.constant 0 : index
    %32 = vector.load %arg1[%c7, %c0_14, %c0_15] : memref<9x1x512xf32, #tpu.memory_space<vmem>>, vector<1x1x512xf32>
    %33 = vector.shape_cast %32 : vector<1x1x512xf32> to vector<1x512xf32>
    %34 = vector.broadcast %33 : vector<1x512xf32> to vector<16x512xf32>
    %35 = arith.mulf %31, %34 : vector<16x512xf32>
    %c495_i32 = arith.constant 495 : i32
    %36 = tpu.dynamic_rotate %0 by %c495_i32 dim 1 : vector<16x512xf32>, i32 -> vector<16x512xf32>
    %c8 = arith.constant 8 : index
    %c0_16 = arith.constant 0 : index
    %c0_17 = arith.constant 0 : index
    %37 = vector.load %arg1[%c8, %c0_16, %c0_17] : memref<9x1x512xf32, #tpu.memory_space<vmem>>, vector<1x1x512xf32>
    %38 = vector.shape_cast %37 : vector<1x1x512xf32> to vector<1x512xf32>
    %39 = vector.broadcast %38 : vector<1x512xf32> to vector<16x512xf32>
    %40 = arith.mulf %36, %39 : vector<16x512xf32>
    %41 = tpu.concatenate %5, %10, %15, %20, %0, %25, %30, %35, %40 in 0 : vector<16x512xf32>, vector<16x512xf32>, vector<16x512xf32>, vector<16x512xf32>, vector<16x512xf32>, vector<16x512xf32>, vector<16x512xf32>, vector<16x512xf32>, vector<16x512xf32> -> vector<144x512xf32>
    %c0_18 = arith.constant 0 : index
    %c0_19 = arith.constant 0 : index
    %42 = vector.load %arg2[%c0_18, %c0_19] : memref<8x144xf32, #tpu.memory_space<vmem>>, vector<8x144xf32>
    %cst = arith.constant dense<0.000000e+00> : vector<8x512xf32>
    %43 = tpu.matmul %42, %41, %cst {dimension_numbers = #tpu.dot_dimension_numbers<[1], [0], [0], [1], [0, 0, 1, 1], [], []>} : vector<8x144xf32>, vector<144x512xf32>, vector<8x512xf32> -> vector<8x512xf32>
    %c0_20 = arith.constant 0 : index
    %c0_21 = arith.constant 0 : index
    %44 = vector.load %arg3[%c0_20, %c0_21] : memref<8x1xf32, #tpu.memory_space<vmem>>, vector<8x1xf32>
    %45 = vector.broadcast %44 : vector<8x1xf32> to vector<8x512xf32>
    %46 = arith.addf %43, %45 : vector<8x512xf32>
    %cst_22 = arith.constant dense<0.000000e+00> : vector<8xf32>
    %47 = vector.multi_reduction <add>, %46, %cst_22 [1] : vector<8x512xf32> to vector<8xf32>
    %48 = vector.shape_cast %47 : vector<8xf32> to vector<8x1xf32>
    %49 = arith.mulf %46, %46 : vector<8x512xf32>
    %cst_23 = arith.constant dense<0.000000e+00> : vector<8xf32>
    %50 = vector.multi_reduction <add>, %49, %cst_23 [1] : vector<8x512xf32> to vector<8xf32>
    %51 = vector.shape_cast %50 : vector<8xf32> to vector<8x1xf32>
    %cst_24 = arith.constant 0.001953125 : f32
    %52 = vector.broadcast %cst_24 : f32 to vector<8x1xf32>
    %53 = arith.mulf %48, %52 : vector<8x1xf32>
    %cst_25 = arith.constant 0.001953125 : f32
    %54 = vector.broadcast %cst_25 : f32 to vector<8x1xf32>
    %55 = arith.mulf %51, %54 : vector<8x1xf32>
    %56 = arith.mulf %53, %53 : vector<8x1xf32>
    %57 = arith.subf %55, %56 : vector<8x1xf32>
    %c0_26 = arith.constant 0 : index
    %c0_27 = arith.constant 0 : index
    %58 = vector.load %arg4[%c0_26, %c0_27] : memref<8x1xf32, #tpu.memory_space<vmem>>, vector<8x1xf32>
    %cst_28 = arith.constant 9.99999974E-6 : f32
    %59 = vector.broadcast %cst_28 : f32 to vector<8x1xf32>
    %60 = arith.addf %57, %59 : vector<8x1xf32>
    %61 = math.rsqrt %60 : vector<8x1xf32>
    %62 = arith.mulf %58, %61 : vector<8x1xf32>
    %c0_29 = arith.constant 0 : index
    %c0_30 = arith.constant 0 : index
    %63 = vector.load %arg5[%c0_29, %c0_30] : memref<8x1xf32, #tpu.memory_space<vmem>>, vector<8x1xf32>
    %64 = arith.mulf %53, %62 : vector<8x1xf32>
    %65 = arith.subf %63, %64 : vector<8x1xf32>
    %66 = vector.broadcast %62 : vector<8x1xf32> to vector<8x512xf32>
    %67 = arith.mulf %46, %66 : vector<8x512xf32>
    %68 = vector.broadcast %65 : vector<8x1xf32> to vector<8x512xf32>
    %69 = arith.addf %67, %68 : vector<8x512xf32>
    %cst_31 = arith.constant 0.000000e+00 : f32
    %70 = vector.broadcast %cst_31 : f32 to vector<8x512xf32>
    %71 = arith.maximumf %69, %70 : vector<8x512xf32>
    %c17_i32_32 = arith.constant 17 : i32
    %72 = tpu.dynamic_rotate %71 by %c17_i32_32 dim 1 : vector<8x512xf32>, i32 -> vector<8x512xf32>
    %c0_33 = arith.constant 0 : index
    %c0_34 = arith.constant 0 : index
    %c0_35 = arith.constant 0 : index
    %73 = vector.load %arg1[%c0_33, %c0_34, %c0_35] : memref<9x1x512xf32, #tpu.memory_space<vmem>>, vector<1x1x512xf32>
    %74 = vector.shape_cast %73 : vector<1x1x512xf32> to vector<1x512xf32>
    %75 = vector.broadcast %74 : vector<1x512xf32> to vector<8x512xf32>
    %76 = arith.mulf %72, %75 : vector<8x512xf32>
    %c16_i32_36 = arith.constant 16 : i32
    %77 = tpu.dynamic_rotate %71 by %c16_i32_36 dim 1 : vector<8x512xf32>, i32 -> vector<8x512xf32>
    %c1_37 = arith.constant 1 : index
    %c0_38 = arith.constant 0 : index
    %c0_39 = arith.constant 0 : index
    %78 = vector.load %arg1[%c1_37, %c0_38, %c0_39] : memref<9x1x512xf32, #tpu.memory_space<vmem>>, vector<1x1x512xf32>
    %79 = vector.shape_cast %78 : vector<1x1x512xf32> to vector<1x512xf32>
    %80 = vector.broadcast %79 : vector<1x512xf32> to vector<8x512xf32>
    %81 = arith.mulf %77, %80 : vector<8x512xf32>
    %c15_i32_40 = arith.constant 15 : i32
    %82 = tpu.dynamic_rotate %71 by %c15_i32_40 dim 1 : vector<8x512xf32>, i32 -> vector<8x512xf32>
    %c2_41 = arith.constant 2 : index
    %c0_42 = arith.constant 0 : index
    %c0_43 = arith.constant 0 : index
    %83 = vector.load %arg1[%c2_41, %c0_42, %c0_43] : memref<9x1x512xf32, #tpu.memory_space<vmem>>, vector<1x1x512xf32>
    %84 = vector.shape_cast %83 : vector<1x1x512xf32> to vector<1x512xf32>
    %85 = vector.broadcast %84 : vector<1x512xf32> to vector<8x512xf32>
    %86 = arith.mulf %82, %85 : vector<8x512xf32>
    %c1_i32_44 = arith.constant 1 : i32
    %87 = tpu.dynamic_rotate %71 by %c1_i32_44 dim 1 : vector<8x512xf32>, i32 -> vector<8x512xf32>
    %c3_45 = arith.constant 3 : index
    %c0_46 = arith.constant 0 : index
    %c0_47 = arith.constant 0 : index
    %88 = vector.load %arg1[%c3_45, %c0_46, %c0_47] : memref<9x1x512xf32, #tpu.memory_space<vmem>>, vector<1x1x512xf32>
    %89 = vector.shape_cast %88 : vector<1x1x512xf32> to vector<1x512xf32>
    %90 = vector.broadcast %89 : vector<1x512xf32> to vector<8x512xf32>
    %91 = arith.mulf %87, %90 : vector<8x512xf32>
    %c511_i32_48 = arith.constant 511 : i32
    %92 = tpu.dynamic_rotate %71 by %c511_i32_48 dim 1 : vector<8x512xf32>, i32 -> vector<8x512xf32>
    %c5_49 = arith.constant 5 : index
    %c0_50 = arith.constant 0 : index
    %c0_51 = arith.constant 0 : index
    %93 = vector.load %arg1[%c5_49, %c0_50, %c0_51] : memref<9x1x512xf32, #tpu.memory_space<vmem>>, vector<1x1x512xf32>
    %94 = vector.shape_cast %93 : vector<1x1x512xf32> to vector<1x512xf32>
    %95 = vector.broadcast %94 : vector<1x512xf32> to vector<8x512xf32>
    %96 = arith.mulf %92, %95 : vector<8x512xf32>
    %c497_i32_52 = arith.constant 497 : i32
    %97 = tpu.dynamic_rotate %71 by %c497_i32_52 dim 1 : vector<8x512xf32>, i32 -> vector<8x512xf32>
    %c6_53 = arith.constant 6 : index
    %c0_54 = arith.constant 0 : index
    %c0_55 = arith.constant 0 : index
    %98 = vector.load %arg1[%c6_53, %c0_54, %c0_55] : memref<9x1x512xf32, #tpu.memory_space<vmem>>, vector<1x1x512xf32>
    %99 = vector.shape_cast %98 : vector<1x1x512xf32> to vector<1x512xf32>
    %100 = vector.broadcast %99 : vector<1x512xf32> to vector<8x512xf32>
    %101 = arith.mulf %97, %100 : vector<8x512xf32>
    %c496_i32_56 = arith.constant 496 : i32
    %102 = tpu.dynamic_rotate %71 by %c496_i32_56 dim 1 : vector<8x512xf32>, i32 -> vector<8x512xf32>
    %c7_57 = arith.constant 7 : index
    %c0_58 = arith.constant 0 : index
    %c0_59 = arith.constant 0 : index
    %103 = vector.load %arg1[%c7_57, %c0_58, %c0_59] : memref<9x1x512xf32, #tpu.memory_space<vmem>>, vector<1x1x512xf32>
    %104 = vector.shape_cast %103 : vector<1x1x512xf32> to vector<1x512xf32>
    %105 = vector.broadcast %104 : vector<1x512xf32> to vector<8x512xf32>
    %106 = arith.mulf %102, %105 : vector<8x512xf32>
    %c495_i32_60 = arith.constant 495 : i32
    %107 = tpu.dynamic_rotate %71 by %c495_i32_60 dim 1 : vector<8x512xf32>, i32 -> vector<8x512xf32>
    %c8_61 = arith.constant 8 : index
    %c0_62 = arith.constant 0 : index
    %c0_63 = arith.constant 0 : index
    %108 = vector.load %arg1[%c8_61, %c0_62, %c0_63] : memref<9x1x512xf32, #tpu.memory_space<vmem>>, vector<1x1x512xf32>
    %109 = vector.shape_cast %108 : vector<1x1x512xf32> to vector<1x512xf32>
    %110 = vector.broadcast %109 : vector<1x512xf32> to vector<8x512xf32>
    %111 = arith.mulf %107, %110 : vector<8x512xf32>
    %112 = tpu.concatenate %76, %81, %86, %91, %71, %96, %101, %106, %111 in 0 : vector<8x512xf32>, vector<8x512xf32>, vector<8x512xf32>, vector<8x512xf32>, vector<8x512xf32>, vector<8x512xf32>, vector<8x512xf32>, vector<8x512xf32>, vector<8x512xf32> -> vector<72x512xf32>
    %c0_64 = arith.constant 0 : index
    %c0_65 = arith.constant 0 : index
    %113 = vector.load %arg6[%c0_64, %c0_65] : memref<4x72xf32, #tpu.memory_space<vmem>>, vector<4x72xf32>
    %cst_66 = arith.constant dense<0.000000e+00> : vector<4x512xf32>
    %114 = tpu.matmul %113, %112, %cst_66 {dimension_numbers = #tpu.dot_dimension_numbers<[1], [0], [0], [1], [0, 0, 1, 1], [], []>} : vector<4x72xf32>, vector<72x512xf32>, vector<4x512xf32> -> vector<4x512xf32>
    %c0_67 = arith.constant 0 : index
    %c0_68 = arith.constant 0 : index
    %115 = vector.load %arg7[%c0_67, %c0_68] : memref<4x1xf32, #tpu.memory_space<vmem>>, vector<4x1xf32>
    %116 = vector.broadcast %115 : vector<4x1xf32> to vector<4x512xf32>
    %117 = arith.addf %114, %116 : vector<4x512xf32>
    %cst_69 = arith.constant dense<0.000000e+00> : vector<4xf32>
    %118 = vector.multi_reduction <add>, %117, %cst_69 [1] : vector<4x512xf32> to vector<4xf32>
    %119 = vector.shape_cast %118 : vector<4xf32> to vector<4x1xf32>
    %120 = arith.mulf %117, %117 : vector<4x512xf32>
    %cst_70 = arith.constant dense<0.000000e+00> : vector<4xf32>
    %121 = vector.multi_reduction <add>, %120, %cst_70 [1] : vector<4x512xf32> to vector<4xf32>
    %122 = vector.shape_cast %121 : vector<4xf32> to vector<4x1xf32>
    %cst_71 = arith.constant 0.001953125 : f32
    %123 = vector.broadcast %cst_71 : f32 to vector<4x1xf32>
    %124 = arith.mulf %119, %123 : vector<4x1xf32>
    %cst_72 = arith.constant 0.001953125 : f32
    %125 = vector.broadcast %cst_72 : f32 to vector<4x1xf32>
    %126 = arith.mulf %122, %125 : vector<4x1xf32>
    %127 = arith.mulf %124, %124 : vector<4x1xf32>
    %128 = arith.subf %126, %127 : vector<4x1xf32>
    %c0_73 = arith.constant 0 : index
    %c0_74 = arith.constant 0 : index
    %129 = vector.load %arg8[%c0_73, %c0_74] : memref<4x1xf32, #tpu.memory_space<vmem>>, vector<4x1xf32>
    %cst_75 = arith.constant 9.99999974E-6 : f32
    %130 = vector.broadcast %cst_75 : f32 to vector<4x1xf32>
    %131 = arith.addf %128, %130 : vector<4x1xf32>
    %132 = math.rsqrt %131 : vector<4x1xf32>
    %133 = arith.mulf %129, %132 : vector<4x1xf32>
    %c0_76 = arith.constant 0 : index
    %c0_77 = arith.constant 0 : index
    %134 = vector.load %arg9[%c0_76, %c0_77] : memref<4x1xf32, #tpu.memory_space<vmem>>, vector<4x1xf32>
    %135 = arith.mulf %124, %133 : vector<4x1xf32>
    %136 = arith.subf %134, %135 : vector<4x1xf32>
    %137 = vector.broadcast %133 : vector<4x1xf32> to vector<4x512xf32>
    %138 = arith.mulf %117, %137 : vector<4x512xf32>
    %139 = vector.broadcast %136 : vector<4x1xf32> to vector<4x512xf32>
    %140 = arith.addf %138, %139 : vector<4x512xf32>
    %cst_78 = arith.constant 0.000000e+00 : f32
    %141 = vector.broadcast %cst_78 : f32 to vector<4x512xf32>
    %142 = arith.maximumf %140, %141 : vector<4x512xf32>
    %c0_79 = arith.constant 0 : index
    %c0_80 = arith.constant 0 : index
    %143 = vector.load %arg10[%c0_79, %c0_80] : memref<4x4xf32, #tpu.memory_space<vmem>>, vector<4x4xf32>
    %cst_81 = arith.constant dense<0.000000e+00> : vector<4x512xf32>
    %144 = tpu.matmul %143, %142, %cst_81 {dimension_numbers = #tpu.dot_dimension_numbers<[1], [0], [0], [1], [0, 0, 1, 1], [], []>} : vector<4x4xf32>, vector<4x512xf32>, vector<4x512xf32> -> vector<4x512xf32>
    %c0_82 = arith.constant 0 : index
    %c0_83 = arith.constant 0 : index
    %145 = vector.load %arg11[%c0_82, %c0_83] : memref<4x1xf32, #tpu.memory_space<vmem>>, vector<4x1xf32>
    %146 = vector.broadcast %145 : vector<4x1xf32> to vector<4x512xf32>
    %147 = arith.addf %144, %146 : vector<4x512xf32>
    %c0_84 = arith.constant 0 : index
    %c0_85 = arith.constant 0 : index
    %148 = vector.load %arg12[%c0_84, %c0_85] : memref<4x512xf32, #tpu.memory_space<vmem>>, vector<4x512xf32>
    tpu.vector_store %arg12[%c0_84, %c0_85], %147 {strides = array<i32>} : memref<4x512xf32, #tpu.memory_space<vmem>>, vector<4x512xf32>,
    return
  }
}

</mosaic_0001>

<llo_original>
// kernel: optimized_head.1
$region0: #{optimized_head.1}
  #allocation0 [shape = 'u32[]', space=smem, size = 0x4, offset = 0x4, fixed_abs, tag = 'smem constant byte address 0x4 - core index']
  #allocation1 [shape = 'u32[144,128]{1,0:T(1,128)}', space=vmem, size = 0x12000, scoped, tag = 'internal scratch']
  %s0 = inlined_call_operand.vmem [shape: f32[16,512], index: 0, kind: input, shape index: {}]
  %s1 = inlined_call_operand.vmem [shape: f32[9,1,512], index: 1, kind: input, shape index: {}]
  %s2 = inlined_call_operand.vmem [shape: f32[8,144], index: 2, kind: input, shape index: {}]
  %s3 = inlined_call_operand.vmem [shape: f32[8,1], index: 3, kind: input, shape index: {}]
  %s4 = inlined_call_operand.vmem [shape: f32[8,1], index: 4, kind: input, shape index: {}]
  %s5 = inlined_call_operand.vmem [shape: f32[8,1], index: 5, kind: input, shape index: {}]
  %s6 = inlined_call_operand.vmem [shape: f32[4,72], index: 6, kind: input, shape index: {}]
  %s7 = inlined_call_operand.vmem [shape: f32[4,1], index: 7, kind: input, shape index: {}]
  %s8 = inlined_call_operand.vmem [shape: f32[4,1], index: 8, kind: input, shape index: {}]
  %s9 = inlined_call_operand.vmem [shape: f32[4,1], index: 9, kind: input, shape index: {}]
  %s10 = inlined_call_operand.vmem [shape: f32[4,4], index: 10, kind: input, shape index: {}]
  %s11 = inlined_call_operand.vmem [shape: f32[4,1], index: 11, kind: input, shape index: {}]
  %s12 = inlined_call_operand.vmem [shape: f32[4,512], index: 12, kind: output, shape index: {}]
  %s13 = sld [smem:[#allocation0]]
  $region58: #{optimized_head.1} parent=0
    _
  %s15 = ssub.s32 1, %s13
  %s16 = scalar_select 0, %s15, %s13
  // Predicated region
  $region2: #{optimized_head.1} parent=0 // pred_check
    _
  $region3: #{optimized_head.1} parent=0 // pred_check_branch
    %18 = sbr.rel (0) target = $region5
  $region4: #{optimized_head.1} parent=0 // pred_region
    _
  $region5: #{optimized_head.1} parent=0 // pred_fallthru
    _
  // Predicated region
  $region6: #{optimized_head.1} parent=0 // pred_check
    _
  $region7: #{optimized_head.1} parent=0 // pred_check_branch
    %20 = sbr.rel (0) target = $region9
  $region8: #{optimized_head.1} parent=0 // pred_region
    _
  $region9: #{optimized_head.1} parent=0 // pred_fallthru
    _
  // Predicated region
  $region10: #{optimized_head.1} parent=0 // pred_check
    _
  $region11: #{optimized_head.1} parent=0 // pred_check_branch
    %22 = sbr.rel (0) target = $region13
  $region12: #{optimized_head.1} parent=0 // pred_region
    _
  $region13: #{optimized_head.1} parent=0 // pred_fallthru
    _
  // Predicated region
  $region14: #{optimized_head.1} parent=0 // pred_check
    _
  $region15: #{optimized_head.1} parent=0 // pred_check_branch
    %24 = sbr.rel (0) target = $region17
  $region16: #{optimized_head.1} parent=0 // pred_region
    _
  $region17: #{optimized_head.1} parent=0 // pred_fallthru
    _
  // Predicated region
  $region18: #{optimized_head.1} parent=0 // pred_check
    _
  $region19: #{optimized_head.1} parent=0 // pred_check_branch
    %26 = sbr.rel (0) target = $region21
  $region20: #{optimized_head.1} parent=0 // pred_region
    _
  $region21: #{optimized_head.1} parent=0 // pred_fallthru
    _
  // Predicated region
  $region22: #{optimized_head.1} parent=0 // pred_check
    _
  $region23: #{optimized_head.1} parent=0 // pred_check_branch
    %28 = sbr.rel (0) target = $region25
  $region24: #{optimized_head.1} parent=0 // pred_region
    _
  $region25: #{optimized_head.1} parent=0 // pred_fallthru
    _
  // Predicated region
  $region26: #{optimized_head.1} parent=0 // pred_check
    _
  $region27: #{optimized_head.1} parent=0 // pred_check_branch
    %30 = sbr.rel (0) target = $region29
  $region28: #{optimized_head.1} parent=0 // pred_region
    _
  $region29: #{optimized_head.1} parent=0 // pred_fallthru
    _
  // Predicated region
  $region30: #{optimized_head.1} parent=0 // pred_check
    _
  $region31: #{optimized_head.1} parent=0 // pred_check_branch
    %32 = sbr.rel (0) target = $region33
  $region32: #{optimized_head.1} parent=0 // pred_region
    _
  $region33: #{optimized_head.1} parent=0 // pred_fallthru
    _
  // Predicated region
  $region34: #{optimized_head.1} parent=0 // pred_check
    _
  $region35: #{optimized_head.1} parent=0 // pred_check_branch
    %34 = sbr.rel (0) target = $region37
  $region36: #{optimized_head.1} parent=0 // pred_region
    _
  $region37: #{optimized_head.1} parent=0 // pred_fallthru
    _
  // Predicated region
  $region38: #{optimized_head.1} parent=0 // pred_check
    _
  $region39: #{optimized_head.1} parent=0 // pred_check_branch
    %36 = sbr.rel (0) target = $region41
  $region40: #{optimized_head.1} parent=0 // pred_region
    _
  $region41: #{optimized_head.1} parent=0 // pred_fallthru
    _
  // Predicated region
  $region42: #{optimized_head.1} parent=0 // pred_check
    _
  $region43: #{optimized_head.1} parent=0 // pred_check_branch
    %38 = sbr.rel (0) target = $region45
  $region44: #{optimized_head.1} parent=0 // pred_region
    _
  $region45: #{optimized_head.1} parent=0 // pred_fallthru
    _
  // Predicated region
  $region46: #{optimized_head.1} parent=0 // pred_check
    _
  $region47: #{optimized_head.1} parent=0 // pred_check_branch
    %40 = sbr.rel (0) target = $region49
  $region48: #{optimized_head.1} parent=0 // pred_region
    _
  $region49: #{optimized_head.1} parent=0 // pred_fallthru
    _
  %v41 = vld [vmem:[%s0] sm:$0xff]
  %v42 = vld [vmem:[%s0 + $0x8] sm:$0xff]
  %v43 = vld [vmem:[%s0 + $0x10] sm:$0xff]
  %v44 = vld [vmem:[%s0 + $0x18] sm:$0xff]
  %v45 = vld [vmem:[%s0 + $0x20] sm:$0xff]
  %v46 = vld [vmem:[%s0 + $0x28] sm:$0xff]
  %v47 = vld [vmem:[%s0 + $0x30] sm:$0xff]
  %v48 = vld [vmem:[%s0 + $0x38] sm:$0xff]
  %49 = vrot.lane.b32.xlu0 %v41, 17
  %v50 = vpop.permute.xlu0 %49
  %51 = vrot.lane.b32.xlu0 %v45, 17
  %v52 = vpop.permute.xlu0 %51
  %53 = vrot.lane.b32.xlu0 %v42, 17
  %v54 = vpop.permute.xlu0 %53
  %55 = vrot.lane.b32.xlu0 %v46, 17
  %v56 = vpop.permute.xlu0 %55
  %57 = vrot.lane.b32.xlu0 %v43, 17
  %v58 = vpop.permute.xlu0 %57
  %59 = vrot.lane.b32.xlu0 %v47, 17
  %v60 = vpop.permute.xlu0 %59
  %61 = vrot.lane.b32.xlu0 %v44, 17
  %v62 = vpop.permute.xlu0 %61
  %63 = vrot.lane.b32.xlu0 %v48, 17
  %v64 = vpop.permute.xlu0 %63
  %v65 = vlaneseq
  %v66 = vand.u32 %v65, 127
  %vm67 = vcmp.lt.s32.totalorder %v66, 17
  %v68 = vsel %vm67, %v58, %v62
  %v69 = vsel %vm67, %v60, %v64
  %v70 = vsel %vm67, %v54, %v58
  %v71 = vsel %vm67, %v56, %v60
  %v72 = vsel %vm67, %v50, %v54
  %v73 = vsel %vm67, %v52, %v56
  %v74 = vsel %vm67, %v62, %v50
  %v75 = vsel %vm67, %v64, %v52
  %v76 = vld [vmem:[%s1] sm:$0xf]
  %v78 = vlaneseq
  %v79 = vshrl.u32 %v78, 7
  %v80 = vsub.s32 0, %v79
  %v81 = vrot.slane %v76, %v80
  %v82 = vlaneseq
  %v83 = vshrl.u32 %v82, 7
  %v84 = vsub.s32 1, %v83
  %v85 = vrot.slane %v76, %v84
  %v86 = vlaneseq
  %v87 = vshrl.u32 %v86, 7
  %v88 = vsub.s32 2, %v87
  %v89 = vrot.slane %v76, %v88
  %v90 = vlaneseq
  %v91 = vshrl.u32 %v90, 7
  %v92 = vsub.s32 3, %v91
  %v93 = vrot.slane %v76, %v92
  %v98 = vmul.f32 %v74, %v81
  %v99 = vmul.f32 %v72, %v85
  %v100 = vmul.f32 %v70, %v89
  %v101 = vmul.f32 %v68, %v93
  %v102 = vmul.f32 %v75, %v81
  %v103 = vmul.f32 %v73, %v85
  %v104 = vmul.f32 %v71, %v89
  %v105 = vmul.f32 %v69, %v93
  %106 = vrot.lane.b32.xlu0 %v41, 16
  %v107 = vpop.permute.xlu0 %106
  %108 = vrot.lane.b32.xlu0 %v45, 16
  %v109 = vpop.permute.xlu0 %108
  %110 = vrot.lane.b32.xlu0 %v42, 16
  %v111 = vpop.permute.xlu0 %110
  %112 = vrot.lane.b32.xlu0 %v46, 16
  %v113 = vpop.permute.xlu0 %112
  %114 = vrot.lane.b32.xlu0 %v43, 16
  %v115 = vpop.permute.xlu0 %114
  %116 = vrot.lane.b32.xlu0 %v47, 16
  %v117 = vpop.permute.xlu0 %116
  %118 = vrot.lane.b32.xlu0 %v44, 16
  %v119 = vpop.permute.xlu0 %118
  %120 = vrot.lane.b32.xlu0 %v48, 16
  %v121 = vpop.permute.xlu0 %120
  %vm122 = vcmp.lt.s32.totalorder %v66, 16
  %v123 = vsel %vm122, %v115, %v119
  %v124 = vsel %vm122, %v117, %v121
  %v125 = vsel %vm122, %v111, %v115
  %v126 = vsel %vm122, %v113, %v117
  %v127 = vsel %vm122, %v107, %v111
  %v128 = vsel %vm122, %v109, %v113
  %v129 = vsel %vm122, %v119, %v107
  %v130 = vsel %vm122, %v121, %v109
  %s131 = scalar_lea.vmem %s1, 4
  %v132 = vld [vmem:[%s131] sm:$0xf]
  %v134 = vlaneseq
  %v135 = vshrl.u32 %v134, 7
  %v136 = vsub.s32 0, %v135
  %v137 = vrot.slane %v132, %v136
  %v138 = vlaneseq
  %v139 = vshrl.u32 %v138, 7
  %v140 = vsub.s32 1, %v139
  %v141 = vrot.slane %v132, %v140
  %v142 = vlaneseq
  %v143 = vshrl.u32 %v142, 7
  %v144 = vsub.s32 2, %v143
  %v145 = vrot.slane %v132, %v144
  %v146 = vlaneseq
  %v147 = vshrl.u32 %v146, 7
  %v148 = vsub.s32 3, %v147
  %v149 = vrot.slane %v132, %v148
  %v154 = vmul.f32 %v129, %v137
  %v155 = vmul.f32 %v127, %v141
  %v156 = vmul.f32 %v125, %v145
  %v157 = vmul.f32 %v123, %v149
  %v158 = vmul.f32 %v130, %v137
  %v159 = vmul.f32 %v128, %v141
  %v160 = vmul.f32 %v126, %v145
  %v161 = vmul.f32 %v124, %v149
  %162 = vrot.lane.b32.xlu0 %v41, 15
  %v163 = vpop.permute.xlu0 %162
  %164 = vrot.lane.b32.xlu0 %v45, 15
  %v165 = vpop.permute.xlu0 %164
  %166 = vrot.lane.b32.xlu0 %v42, 15
  %v167 = vpop.permute.xlu0 %166
  %168 = vrot.lane.b32.xlu0 %v46, 15
  %v169 = vpop.permute.xlu0 %168
  %170 = vrot.lane.b32.xlu0 %v43, 15
  %v171 = vpop.permute.xlu0 %170
  %172 = vrot.lane.b32.xlu0 %v47, 15
  %v173 = vpop.permute.xlu0 %172
  %174 = vrot.lane.b32.xlu0 %v44, 15
  %v175 = vpop.permute.xlu0 %174
  %176 = vrot.lane.b32.xlu0 %v48, 15
  %v177 = vpop.permute.xlu0 %176
  %vm178 = vcmp.lt.s32.totalorder %v66, 15
  %v179 = vsel %vm178, %v171, %v175
  %v180 = vsel %vm178, %v173, %v177
  %v181 = vsel %vm178, %v167, %v171
  %v182 = vsel %vm178, %v169, %v173
  %v183 = vsel %vm178, %v163, %v167
  %v184 = vsel %vm178, %v165, %v169
  %v185 = vsel %vm178, %v175, %v163
  %v186 = vsel %vm178, %v177, %v165
  %s187 = scalar_lea.vmem %s1, 8
  %v188 = vld [vmem:[%s187] sm:$0xf]
  %v190 = vlaneseq
  %v191 = vshrl.u32 %v190, 7
  %v192 = vsub.s32 0, %v191
  %v193 = vrot.slane %v188, %v192
  %v194 = vlaneseq
  %v195 = vshrl.u32 %v194, 7
  %v196 = vsub.s32 1, %v195
  %v197 = vrot.slane %v188, %v196
  %v198 = vlaneseq
  %v199 = vshrl.u32 %v198, 7
  %v200 = vsub.s32 2, %v199
  %v201 = vrot.slane %v188, %v200
  %v202 = vlaneseq
  %v203 = vshrl.u32 %v202, 7
  %v204 = vsub.s32 3, %v203
  %v205 = vrot.slane %v188, %v204
  %v210 = vmul.f32 %v185, %v193
  %v211 = vmul.f32 %v183, %v197
  %v212 = vmul.f32 %v181, %v201
  %v213 = vmul.f32 %v179, %v205
  %v214 = vmul.f32 %v186, %v193
  %v215 = vmul.f32 %v184, %v197
  %v216 = vmul.f32 %v182, %v201
  %v217 = vmul.f32 %v180, %v205
  %218 = vrot.lane.b32.xlu0 %v41, 1
  %v219 = vpop.permute.xlu0 %218
  %220 = vrot.lane.b32.xlu0 %v45, 1
  %v221 = vpop.permute.xlu0 %220
  %222 = vrot.lane.b32.xlu0 %v42, 1
  %v223 = vpop.permute.xlu0 %222
  %224 = vrot.lane.b32.xlu0 %v46, 1
  %v225 = vpop.permute.xlu0 %224
  %226 = vrot.lane.b32.xlu0 %v43, 1
  %v227 = vpop.permute.xlu0 %226
  %228 = vrot.lane.b32.xlu0 %v47, 1
  %v229 = vpop.permute.xlu0 %228
  %230 = vrot.lane.b32.xlu0 %v44, 1
  %v231 = vpop.permute.xlu0 %230
  %232 = vrot.lane.b32.xlu0 %v48, 1
  %v233 = vpop.permute.xlu0 %232
  %vm234 = vcmp.lt.s32.totalorder %v66, 1
  %v235 = vsel %vm234, %v227, %v231
  %v236 = vsel %vm234, %v229, %v233
  %v237 = vsel %vm234, %v223, %v227
  %v238 = vsel %vm234, %v225, %v229
  %v239 = vsel %vm234, %v219, %v223
  %v240 = vsel %vm234, %v221, %v225
  %v241 = vsel %vm234, %v231, %v219
  %v242 = vsel %vm234, %v233, %v221
  %s243 = scalar_lea.vmem %s1, 12
  %v244 = vld [vmem:[%s243] sm:$0xf]
  %v246 = vlaneseq
  %v247 = vshrl.u32 %v246, 7
  %v248 = vsub.s32 0, %v247
  %v249 = vrot.slane %v244, %v248
  %v250 = vlaneseq
  %v251 = vshrl.u32 %v250, 7
  %v252 = vsub.s32 1, %v251
  %v253 = vrot.slane %v244, %v252
  %v254 = vlaneseq
  %v255 = vshrl.u32 %v254, 7
  %v256 = vsub.s32 2, %v255
  %v257 = vrot.slane %v244, %v256
  %v258 = vlaneseq
  %v259 = vshrl.u32 %v258, 7
  %v260 = vsub.s32 3, %v259
  %v261 = vrot.slane %v244, %v260
  %v266 = vmul.f32 %v241, %v249
  %v267 = vmul.f32 %v239, %v253
  %v268 = vmul.f32 %v237, %v257
  %v269 = vmul.f32 %v235, %v261
  %v270 = vmul.f32 %v242, %v249
  %v271 = vmul.f32 %v240, %v253
  %v272 = vmul.f32 %v238, %v257
  %v273 = vmul.f32 %v236, %v261
  %274 = vrot.lane.b32.xlu0 %v41, 127
  %v275 = vpop.permute.xlu0 %274
  %276 = vrot.lane.b32.xlu0 %v45, 127
  %v277 = vpop.permute.xlu0 %276
  %278 = vrot.lane.b32.xlu0 %v42, 127
  %v279 = vpop.permute.xlu0 %278
  %280 = vrot.lane.b32.xlu0 %v46, 127
  %v281 = vpop.permute.xlu0 %280
  %282 = vrot.lane.b32.xlu0 %v43, 127
  %v283 = vpop.permute.xlu0 %282
  %284 = vrot.lane.b32.xlu0 %v47, 127
  %v285 = vpop.permute.xlu0 %284
  %286 = vrot.lane.b32.xlu0 %v44, 127
  %v287 = vpop.permute.xlu0 %286
  %288 = vrot.lane.b32.xlu0 %v48, 127
  %v289 = vpop.permute.xlu0 %288
  %vm290 = vcmp.lt.s32.totalorder %v66, 127
  %v291 = vsel %vm290, %v283, %v287
  %v292 = vsel %vm290, %v285, %v289
  %v293 = vsel %vm290, %v279, %v283
  %v294 = vsel %vm290, %v281, %v285
  %v295 = vsel %vm290, %v275, %v279
  %v296 = vsel %vm290, %v277, %v281
  %v297 = vsel %vm290, %v287, %v275
  %v298 = vsel %vm290, %v289, %v277
  %s299 = scalar_lea.vmem %s1, 20
  %v300 = vld [vmem:[%s299] sm:$0xf]
  %v302 = vlaneseq
  %v303 = vshrl.u32 %v302, 7
  %v304 = vsub.s32 0, %v303
  %v305 = vrot.slane %v300, %v304
  %v306 = vlaneseq
  %v307 = vshrl.u32 %v306, 7
  %v308 = vsub.s32 1, %v307
  %v309 = vrot.slane %v300, %v308
  %v310 = vlaneseq
  %v311 = vshrl.u32 %v310, 7
  %v312 = vsub.s32 2, %v311
  %v313 = vrot.slane %v300, %v312
  %v314 = vlaneseq
  %v315 = vshrl.u32 %v314, 7
  %v316 = vsub.s32 3, %v315
  %v317 = vrot.slane %v300, %v316
  %v322 = vmul.f32 %v295, %v305
  %v323 = vmul.f32 %v293, %v309
  %v324 = vmul.f32 %v291, %v313
  %v325 = vmul.f32 %v297, %v317
  %v326 = vmul.f32 %v296, %v305
  %v327 = vmul.f32 %v294, %v309
  %v328 = vmul.f32 %v292, %v313
  %v329 = vmul.f32 %v298, %v317
  %330 = vrot.lane.b32.xlu0 %v41, 113
  %v331 = vpop.permute.xlu0 %330
  %332 = vrot.lane.b32.xlu0 %v45, 113
  %v333 = vpop.permute.xlu0 %332
  %334 = vrot.lane.b32.xlu0 %v42, 113
  %v335 = vpop.permute.xlu0 %334
  %336 = vrot.lane.b32.xlu0 %v46, 113
  %v337 = vpop.permute.xlu0 %336
  %338 = vrot.lane.b32.xlu0 %v43, 113
  %v339 = vpop.permute.xlu0 %338
  %340 = vrot.lane.b32.xlu0 %v47, 113
  %v341 = vpop.permute.xlu0 %340
  %342 = vrot.lane.b32.xlu0 %v44, 113
  %v343 = vpop.permute.xlu0 %342
  %344 = vrot.lane.b32.xlu0 %v48, 113
  %v345 = vpop.permute.xlu0 %344
  %vm346 = vcmp.lt.s32.totalorder %v66, 113
  %v347 = vsel %vm346, %v339, %v343
  %v348 = vsel %vm346, %v341, %v345
  %v349 = vsel %vm346, %v335, %v339
  %v350 = vsel %vm346, %v337, %v341
  %v351 = vsel %vm346, %v331, %v335
  %v352 = vsel %vm346, %v333, %v337
  %v353 = vsel %vm346, %v343, %v331
  %v354 = vsel %vm346, %v345, %v333
  %s355 = scalar_lea.vmem %s1, 24
  %v356 = vld [vmem:[%s355] sm:$0xf]
  %v358 = vlaneseq
  %v359 = vshrl.u32 %v358, 7
  %v360 = vsub.s32 0, %v359
  %v361 = vrot.slane %v356, %v360
  %v362 = vlaneseq
  %v363 = vshrl.u32 %v362, 7
  %v364 = vsub.s32 1, %v363
  %v365 = vrot.slane %v356, %v364
  %v366 = vlaneseq
  %v367 = vshrl.u32 %v366, 7
  %v368 = vsub.s32 2, %v367
  %v369 = vrot.slane %v356, %v368
  %v370 = vlaneseq
  %v371 = vshrl.u32 %v370, 7
  %v372 = vsub.s32 3, %v371
  %v373 = vrot.slane %v356, %v372
  %v378 = vmul.f32 %v351, %v361
  %v379 = vmul.f32 %v349, %v365
  %v380 = vmul.f32 %v347, %v369
  %v381 = vmul.f32 %v353, %v373
  %v382 = vmul.f32 %v352, %v361
  %v383 = vmul.f32 %v350, %v365
  %v384 = vmul.f32 %v348, %v369
  %v385 = vmul.f32 %v354, %v373
  %386 = vrot.lane.b32.xlu0 %v41, 112
  %v387 = vpop.permute.xlu0 %386
  %388 = vrot.lane.b32.xlu0 %v45, 112
  %v389 = vpop.permute.xlu0 %388
  %390 = vrot.lane.b32.xlu0 %v42, 112
  %v391 = vpop.permute.xlu0 %390
  %392 = vrot.lane.b32.xlu0 %v46, 112
  %v393 = vpop.permute.xlu0 %392
  %394 = vrot.lane.b32.xlu0 %v43, 112
  %v395 = vpop.permute.xlu0 %394
  %396 = vrot.lane.b32.xlu0 %v47, 112
  %v397 = vpop.permute.xlu0 %396
  %398 = vrot.lane.b32.xlu0 %v44, 112
  %v399 = vpop.permute.xlu0 %398
  %400 = vrot.lane.b32.xlu0 %v48, 112
  %v401 = vpop.permute.xlu0 %400
  %vm402 = vcmp.lt.s32.totalorder %v66, 112
  %v403 = vsel %vm402, %v395, %v399
  %v404 = vsel %vm402, %v397, %v401
  %v405 = vsel %vm402, %v391, %v395
  %v406 = vsel %vm402, %v393, %v397
  %v407 = vsel %vm402, %v387, %v391
  %v408 = vsel %vm402, %v389, %v393
  %v409 = vsel %vm402, %v399, %v387
  %v410 = vsel %vm402, %v401, %v389
  %s411 = scalar_lea.vmem %s1, 28
  %v412 = vld [vmem:[%s411] sm:$0xf]
  %v414 = vlaneseq
  %v415 = vshrl.u32 %v414, 7
  %v416 = vsub.s32 0, %v415
  %v417 = vrot.slane %v412, %v416
  %v418 = vlaneseq
  %v419 = vshrl.u32 %v418, 7
  %v420 = vsub.s32 1, %v419
  %v421 = vrot.slane %v412, %v420
  %v422 = vlaneseq
  %v423 = vshrl.u32 %v422, 7
  %v424 = vsub.s32 2, %v423
  %v425 = vrot.slane %v412, %v424
  %v426 = vlaneseq
  %v427 = vshrl.u32 %v426, 7
  %v428 = vsub.s32 3, %v427
  %v429 = vrot.slane %v412, %v428
  %v434 = vmul.f32 %v407, %v417
  %v435 = vmul.f32 %v405, %v421
  %v436 = vmul.f32 %v403, %v425
  %v437 = vmul.f32 %v409, %v429
  %v438 = vmul.f32 %v408, %v417
  %v439 = vmul.f32 %v406, %v421
  %v440 = vmul.f32 %v404, %v425
  %v441 = vmul.f32 %v410, %v429
  %442 = vrot.lane.b32.xlu0 %v41, 111
  %v443 = vpop.permute.xlu0 %442
  %444 = vrot.lane.b32.xlu0 %v45, 111
  %v445 = vpop.permute.xlu0 %444
  %446 = vrot.lane.b32.xlu0 %v42, 111
  %v447 = vpop.permute.xlu0 %446
  %448 = vrot.lane.b32.xlu0 %v46, 111
  %v449 = vpop.permute.xlu0 %448
  %450 = vrot.lane.b32.xlu0 %v43, 111
  %v451 = vpop.permute.xlu0 %450
  %452 = vrot.lane.b32.xlu0 %v47, 111
  %v453 = vpop.permute.xlu0 %452
  %454 = vrot.lane.b32.xlu0 %v44, 111
  %v455 = vpop.permute.xlu0 %454
  %456 = vrot.lane.b32.xlu0 %v48, 111
  %v457 = vpop.permute.xlu0 %456
  %vm458 = vcmp.lt.s32.totalorder %v66, 111
  %v459 = vsel %vm458, %v451, %v455
  %v460 = vsel %vm458, %v453, %v457
  %v461 = vsel %vm458, %v447, %v451
  %v462 = vsel %vm458, %v449, %v453
  %v463 = vsel %vm458, %v443, %v447
  %v464 = vsel %vm458, %v445, %v449
  %v465 = vsel %vm458, %v455, %v443
  %v466 = vsel %vm458, %v457, %v445
  %s467 = scalar_lea.vmem %s1, 32
  %v468 = vld [vmem:[%s467] sm:$0xf]
  %v470 = vlaneseq
  %v471 = vshrl.u32 %v470, 7
  %v472 = vsub.s32 0, %v471
  %v473 = vrot.slane %v468, %v472
  %v474 = vlaneseq
  %v475 = vshrl.u32 %v474, 7
  %v476 = vsub.s32 1, %v475
  %v477 = vrot.slane %v468, %v476
  %v478 = vlaneseq
  %v479 = vshrl.u32 %v478, 7
  %v480 = vsub.s32 2, %v479
  %v481 = vrot.slane %v468, %v480
  %v482 = vlaneseq
  %v483 = vshrl.u32 %v482, 7
  %v484 = vsub.s32 3, %v483
  %v485 = vrot.slane %v468, %v484
  %v490 = vmul.f32 %v463, %v473
  %v491 = vmul.f32 %v461, %v477
  %v492 = vmul.f32 %v459, %v481
  %v493 = vmul.f32 %v465, %v485
  %v494 = vmul.f32 %v464, %v473
  %v495 = vmul.f32 %v462, %v477
  %v496 = vmul.f32 %v460, %v481
  %v497 = vmul.f32 %v466, %v485
  %v498 = vld [vmem:[%s2] sm:$0xff]
  %v499 = vld [vmem:[%s2 + $0x8] sm:$0xff]
  %v500 = vld [vmem:[%s3] sm:$0xff]
  %502 = vset.pattern.permute.xlu0 0
  %503 = vperm.xlu0 %502, %v500
  %v504 = vpop.permute.xlu0 %503
  %vm506 = vcmask 130048
  %v508 = vsel %vm506, %v499, 0
  %510 = vmatprep.subr.mxu0 %v439
  %511 = vmatpush1.msra.mxu0 %v438
  %512 = vmatprep.subr.mxu0 %v435
  %513 = vmatpush1.msra.mxu0 %v434
  %514 = vmatprep.subr.mxu0 %v383
  %515 = vmatpush1.msra.mxu0 %v382
  %516 = vmatprep.subr.mxu0 %v379
  %517 = vmatpush1.msra.mxu0 %v378
  %518 = vmatprep.subr.mxu0 %v327
  %519 = vmatpush1.msra.mxu0 %v326
  %520 = vmatprep.subr.mxu0 %v323
  %521 = vmatpush1.msra.mxu0 %v322
  %522 = vmatprep.subr.mxu0 %v46
  %523 = vmatpush1.msra.mxu0 %v45
  %524 = vmatprep.subr.mxu0 %v42
  %525 = vmatpush1.msra.mxu0 %v41
  %526 = vmatprep.subr.mxu0 %v271
  %527 = vmatpush1.msra.mxu0 %v270
  %528 = vmatprep.subr.mxu0 %v267
  %529 = vmatpush1.msra.mxu0 %v266
  %530 = vmatprep.subr.mxu0 %v215
  %531 = vmatpush1.msra.mxu0 %v214
  %532 = vmatprep.subr.mxu0 %v211
  %533 = vmatpush1.msra.mxu0 %v210
  %534 = vmatprep.subr.mxu0 %v159
  %535 = vmatpush1.msra.mxu0 %v158
  %536 = vmatprep.subr.mxu0 %v155
  %537 = vmatpush1.msra.mxu0 %v154
  %538 = vmatprep.subr.mxu0 %v103
  %539 = vmatpush1.msra.mxu0 %v102
  %540 = vmatprep.subr.mxu0 %v99
  %541 = vmatpush1.msra.mxu0 %v98
  %542 = vmatprep.subr.mxu0 0.0
  %543 = vmatpush2.msra.mxu0 0.0
  %544 = vmatprep.subr.mxu0 0.0
  %545 = vmatpush2.msra.mxu0 0.0
  %546 = vmatprep.subr.mxu0 0.0
  %547 = vmatpush2.msra.mxu0 0.0
  %548 = vmatprep.subr.mxu0 0.0
  %549 = vmatpush2.msra.mxu0 0.0
  %550 = vmatprep.subr.mxu0 0.0
  %551 = vmatpush2.msra.mxu0 0.0
  %552 = vmatprep.subr.mxu0 0.0
  %553 = vmatpush2.msra.mxu0 0.0
  %554 = vmatprep.subr.mxu0 0.0
  %555 = vmatpush2.msra.mxu0 0.0
  %556 = vmatprep.subr.mxu0 0.0
  %557 = vmatpush2.msra.mxu0 0.0
  %558 = vmatprep.subr.mxu0 0.0
  %559 = vmatpush2.msra.mxu0 0.0
  %560 = vmatprep.subr.mxu0 0.0
  %561 = vmatpush2.msra.mxu0 0.0
  %562 = vmatprep.subr.mxu0 0.0
  %563 = vmatpush2.msra.mxu0 0.0
  %564 = vmatprep.subr.mxu0 0.0
  %565 = vmatpush2.msra.mxu0 0.0
  %566 = vmatprep.subr.mxu0 0.0
  %567 = vmatpush2.msra.mxu0 0.0
  %568 = vmatprep.subr.mxu0 0.0
  %569 = vmatpush2.msra.mxu0 0.0
  %570 = vmatprep.subr.mxu0 %v495
  %571 = vmatpush2.msra.mxu0 %v494
  %572 = vmatprep.subr.mxu0 %v491
  %573 = vmatpush2.msra.mxu0 %v490
  %574 = vmatprep.mubr.f32.mxu0 %v508
  %575 = vmatmul.mubr.f32.gmra.mxu0 %v498
  %v576 = vpop.f32.mrf.mxu0
  %v577 = vadd.f32 %v504, %v576
  %v578 = vpop.f32.mrf.mxu0
  %v579 = vadd.f32 %v504, %v578
  %580 = vdwg.mxu0
  %581 = vmatprep.subr.mxu0 %v441
  %582 = vmatpush1.msra.mxu0 %v440
  %583 = vmatprep.subr.mxu0 %v437
  %584 = vmatpush1.msra.mxu0 %v436
  %585 = vmatprep.subr.mxu0 %v385
  %586 = vmatpush1.msra.mxu0 %v384
  %587 = vmatprep.subr.mxu0 %v381
  %588 = vmatpush1.msra.mxu0 %v380
  %589 = vmatprep.subr.mxu0 %v329
  %590 = vmatpush1.msra.mxu0 %v328
  %591 = vmatprep.subr.mxu0 %v325
  %592 = vmatpush1.msra.mxu0 %v324
  %593 = vmatprep.subr.mxu0 %v48
  %594 = vmatpush1.msra.mxu0 %v47
  %595 = vmatprep.subr.mxu0 %v44
  %596 = vmatpush1.msra.mxu0 %v43
  %597 = vmatprep.subr.mxu0 %v273
  %598 = vmatpush1.msra.mxu0 %v272
  %599 = vmatprep.subr.mxu0 %v269
  %600 = vmatpush1.msra.mxu0 %v268
  %601 = vmatprep.subr.mxu0 %v217
  %602 = vmatpush1.msra.mxu0 %v216
  %603 = vmatprep.subr.mxu0 %v213
  %604 = vmatpush1.msra.mxu0 %v212
  %605 = vmatprep.subr.mxu0 %v161
  %606 = vmatpush1.msra.mxu0 %v160
  %607 = vmatprep.subr.mxu0 %v157
  %608 = vmatpush1.msra.mxu0 %v156
  %609 = vmatprep.subr.mxu0 %v105
  %610 = vmatpush1.msra.mxu0 %v104
  %611 = vmatprep.subr.mxu0 %v101
  %612 = vmatpush1.msra.mxu0 %v100
  %613 = vmatprep.subr.mxu0 0.0
  %614 = vmatpush2.msra.mxu0 0.0
  %615 = vmatprep.subr.mxu0 0.0
  %616 = vmatpush2.msra.mxu0 0.0
  %617 = vmatprep.subr.mxu0 0.0
  %618 = vmatpush2.msra.mxu0 0.0
  %619 = vmatprep.subr.mxu0 0.0
  %620 = vmatpush2.msra.mxu0 0.0
  %621 = vmatprep.subr.mxu0 0.0
  %622 = vmatpush2.msra.mxu0 0.0
  %623 = vmatprep.subr.mxu0 0.0
  %624 = vmatpush2.msra.mxu0 0.0
  %625 = vmatprep.subr.mxu0 0.0
  %626 = vmatpush2.msra.mxu0 0.0
  %627 = vmatprep.subr.mxu0 0.0
  %628 = vmatpush2.msra.mxu0 0.0
  %629 = vmatprep.subr.mxu0 0.0
  %630 = vmatpush2.msra.mxu0 0.0
  %631 = vmatprep.subr.mxu0 0.0
  %632 = vmatpush2.msra.mxu0 0.0
  %633 = vmatprep.subr.mxu0 0.0
  %634 = vmatpush2.msra.mxu0 0.0
  %635 = vmatprep.subr.mxu0 0.0
  %636 = vmatpush2.msra.mxu0 0.0
  %637 = vmatprep.subr.mxu0 0.0
  %638 = vmatpush2.msra.mxu0 0.0
  %639 = vmatprep.subr.mxu0 0.0
  %640 = vmatpush2.msra.mxu0 0.0
  %641 = vmatprep.subr.mxu0 %v497
  %642 = vmatpush2.msra.mxu0 %v496
  %643 = vmatprep.subr.mxu0 %v493
  %644 = vmatpush2.msra.mxu0 %v492
  %645 = vmatprep.mubr.f32.mxu0 %v508
  %646 = vmatmul.mubr.f32.gmra.mxu0 %v498
  %v647 = vpop.f32.mrf.mxu0
  %v648 = vadd.f32 %v504, %v647
  %v649 = vpop.f32.mrf.mxu0
  %v650 = vadd.f32 %v504, %v649
  %651 = vdwg.mxu0
  %v652 = vadd.f32 %v577, %v579
  %v653 = vadd.f32 %v652, %v648
  %v654 = vadd.f32 %v653, %v650
  %655 = vadd.xlane.f32.xlu0 %v654
  %v656 = vpop.xlane.xlu0 %655
  %v657 = vmul.f32 %v577, %v577
  %v658 = vmul.f32 %v579, %v579
  %v659 = vmul.f32 %v648, %v648
  %v660 = vmul.f32 %v650, %v650
  %v661 = vadd.f32 %v657, %v658
  %v662 = vadd.f32 %v661, %v659
  %v663 = vadd.f32 %v662, %v660
  %664 = vadd.xlane.f32.xlu0 %v663
  %v665 = vpop.xlane.xlu0 %664
  %v666 = vmul.f32 %v656, 0.001953125
  %v667 = vmul.f32 %v665, 0.001953125
  %v668 = vmul.f32 %v666, %v666
  %v669 = vsub.f32 %v667, %v668
  %v670 = vld [vmem:[%s4] sm:$0xff]
  %v671 = vadd.f32 %v669, 1e-05
  %v672 = vrsqrt.pop %v671
  %v673 = vmul.f32 %v670, %v672
  %v674 = vld [vmem:[%s5] sm:$0xff]
  %v675 = vmul.f32 %v666, %v673
  %v676 = vsub.f32 %v674, %v675
  %678 = vset.pattern.permute.xlu0 0
  %679 = vperm.xlu0 %678, %v673
  %v680 = vpop.permute.xlu0 %679
  %v682 = vmul.f32 %v577, %v680
  %v683 = vmul.f32 %v579, %v680
  %v684 = vmul.f32 %v648, %v680
  %v685 = vmul.f32 %v650, %v680
  %687 = vset.pattern.permute.xlu0 0
  %688 = vperm.xlu0 %687, %v676
  %v689 = vpop.permute.xlu0 %688
  %v691 = vadd.f32 %v682, %v689
  %v692 = vadd.f32 %v683, %v689
  %v693 = vadd.f32 %v684, %v689
  %v694 = vadd.f32 %v685, %v689
  %v695 = vmax.f32 %v691, 0.0
  %v696 = vmax.f32 %v692, 0.0
  %v697 = vmax.f32 %v693, 0.0
  %v698 = vmax.f32 %v694, 0.0
  %699 = vrot.lane.b32.xlu0 %v695, 17
  %v700 = vpop.permute.xlu0 %699
  %701 = vrot.lane.b32.xlu0 %v696, 17
  %v702 = vpop.permute.xlu0 %701
  %703 = vrot.lane.b32.xlu0 %v697, 17
  %v704 = vpop.permute.xlu0 %703
  %705 = vrot.lane.b32.xlu0 %v698, 17
  %v706 = vpop.permute.xlu0 %705
  %v707 = vsel %vm67, %v704, %v706
  %v708 = vsel %vm67, %v702, %v704
  %v709 = vsel %vm67, %v700, %v702
  %v710 = vsel %vm67, %v706, %v700
  %v711 = vmul.f32 %v710, %v81
  %v712 = vmul.f32 %v709, %v85
  %v713 = vmul.f32 %v708, %v89
  %v714 = vmul.f32 %v707, %v93
  %715 = vrot.lane.b32.xlu0 %v695, 16
  %v716 = vpop.permute.xlu0 %715
  %717 = vrot.lane.b32.xlu0 %v696, 16
  %v718 = vpop.permute.xlu0 %717
  %719 = vrot.lane.b32.xlu0 %v697, 16
  %v720 = vpop.permute.xlu0 %719
  %721 = vrot.lane.b32.xlu0 %v698, 16
  %v722 = vpop.permute.xlu0 %721
  %v723 = vsel %vm122, %v720, %v722
  %v724 = vsel %vm122, %v718, %v720
  %v725 = vsel %vm122, %v716, %v718
  %v726 = vsel %vm122, %v722, %v716
  %v727 = vmul.f32 %v726, %v137
  %v728 = vmul.f32 %v725, %v141
  %v729 = vmul.f32 %v724, %v145
  %v730 = vmul.f32 %v723, %v149
  %731 = vrot.lane.b32.xlu0 %v695, 15
  %v732 = vpop.permute.xlu0 %731
  %733 = vrot.lane.b32.xlu0 %v696, 15
  %v734 = vpop.permute.xlu0 %733
  %735 = vrot.lane.b32.xlu0 %v697, 15
  %v736 = vpop.permute.xlu0 %735
  %737 = vrot.lane.b32.xlu0 %v698, 15
  %v738 = vpop.permute.xlu0 %737
  %v739 = vsel %vm178, %v736, %v738
  %v740 = vsel %vm178, %v734, %v736
  %v741 = vsel %vm178, %v732, %v734
  %v742 = vsel %vm178, %v738, %v732
  %v743 = vmul.f32 %v742, %v193
  %v744 = vmul.f32 %v741, %v197
  %v745 = vmul.f32 %v740, %v201
  %v746 = vmul.f32 %v739, %v205
  %747 = vrot.lane.b32.xlu0 %v695, 1
  %v748 = vpop.permute.xlu0 %747
  %749 = vrot.lane.b32.xlu0 %v696, 1
  %v750 = vpop.permute.xlu0 %749
  %751 = vrot.lane.b32.xlu0 %v697, 1
  %v752 = vpop.permute.xlu0 %751
  %753 = vrot.lane.b32.xlu0 %v698, 1
  %v754 = vpop.permute.xlu0 %753
  %v755 = vsel %vm234, %v752, %v754
  %v756 = vsel %vm234, %v750, %v752
  %v757 = vsel %vm234, %v748, %v750
  %v758 = vsel %vm234, %v754, %v748
  %v759 = vmul.f32 %v758, %v249
  %v760 = vmul.f32 %v757, %v253
  %v761 = vmul.f32 %v756, %v257
  %v762 = vmul.f32 %v755, %v261
  %763 = vrot.lane.b32.xlu0 %v695, 127
  %v764 = vpop.permute.xlu0 %763
  %765 = vrot.lane.b32.xlu0 %v696, 127
  %v766 = vpop.permute.xlu0 %765
  %767 = vrot.lane.b32.xlu0 %v697, 127
  %v768 = vpop.permute.xlu0 %767
  %769 = vrot.lane.b32.xlu0 %v698, 127
  %v770 = vpop.permute.xlu0 %769
  %v771 = vsel %vm290, %v768, %v770
  %v772 = vsel %vm290, %v766, %v768
  %v773 = vsel %vm290, %v764, %v766
  %v774 = vsel %vm290, %v770, %v764
  %v775 = vmul.f32 %v773, %v305
  %v776 = vmul.f32 %v772, %v309
  %v777 = vmul.f32 %v771, %v313
  %v778 = vmul.f32 %v774, %v317
  %779 = vrot.lane.b32.xlu0 %v695, 113
  %v780 = vpop.permute.xlu0 %779
  %781 = vrot.lane.b32.xlu0 %v696, 113
  %v782 = vpop.permute.xlu0 %781
  %783 = vrot.lane.b32.xlu0 %v697, 113
  %v784 = vpop.permute.xlu0 %783
  %785 = vrot.lane.b32.xlu0 %v698, 113
  %v786 = vpop.permute.xlu0 %785
  %v787 = vsel %vm346, %v784, %v786
  %v788 = vsel %vm346, %v782, %v784
  %v789 = vsel %vm346, %v780, %v782
  %v790 = vsel %vm346, %v786, %v780
  %v791 = vmul.f32 %v789, %v361
  %v792 = vmul.f32 %v788, %v365
  %v793 = vmul.f32 %v787, %v369
  %v794 = vmul.f32 %v790, %v373
  %795 = vrot.lane.b32.xlu0 %v695, 112
  %v796 = vpop.permute.xlu0 %795
  %797 = vrot.lane.b32.xlu0 %v696, 112
  %v798 = vpop.permute.xlu0 %797
  %799 = vrot.lane.b32.xlu0 %v697, 112
  %v800 = vpop.permute.xlu0 %799
  %801 = vrot.lane.b32.xlu0 %v698, 112
  %v802 = vpop.permute.xlu0 %801
  %v803 = vsel %vm402, %v800, %v802
  %v804 = vsel %vm402, %v798, %v800
  %v805 = vsel %vm402, %v796, %v798
  %v806 = vsel %vm402, %v802, %v796
  %v807 = vmul.f32 %v805, %v417
  %v808 = vmul.f32 %v804, %v421
  %v809 = vmul.f32 %v803, %v425
  %v810 = vmul.f32 %v806, %v429
  %811 = vrot.lane.b32.xlu0 %v695, 111
  %v812 = vpop.permute.xlu0 %811
  %813 = vrot.lane.b32.xlu0 %v696, 111
  %v814 = vpop.permute.xlu0 %813
  %815 = vrot.lane.b32.xlu0 %v697, 111
  %v816 = vpop.permute.xlu0 %815
  %817 = vrot.lane.b32.xlu0 %v698, 111
  %v818 = vpop.permute.xlu0 %817
  %v819 = vsel %vm458, %v816, %v818
  %v820 = vsel %vm458, %v814, %v816
  %v821 = vsel %vm458, %v812, %v814
  %v822 = vsel %vm458, %v818, %v812
  %v823 = vmul.f32 %v821, %v473
  %v824 = vmul.f32 %v820, %v477
  %v825 = vmul.f32 %v819, %v481
  %v826 = vmul.f32 %v822, %v485
  %v827 = vld [vmem:[%s6] sm:$0xf]
  %v828 = vld [vmem:[%s7] sm:$0xf]
  %830 = vset.pattern.permute.xlu0 0
  %831 = vperm.xlu0 %830, %v828
  %v832 = vpop.permute.xlu0 %831
  %vm834 = vcmask 588800
  %v836 = vsel %vm834, %v827, 0
  %838 = vmatprep.subr.mxu0 0.0
  %839 = vmatpush1.msra.mxu0 0.0
  %840 = vmatprep.subr.mxu0 0.0
  %841 = vmatpush1.msra.mxu0 0.0
  %842 = vmatprep.subr.mxu0 0.0
  %843 = vmatpush1.msra.mxu0 0.0
  %844 = vmatprep.subr.mxu0 0.0
  %845 = vmatpush1.msra.mxu0 0.0
  %846 = vmatprep.subr.mxu0 0.0
  %847 = vmatpush1.msra.mxu0 0.0
  %848 = vmatprep.subr.mxu0 0.0
  %849 = vmatpush1.msra.mxu0 0.0
  %850 = vmatprep.subr.mxu0 0.0
  %851 = vmatpush1.msra.mxu0 0.0
  %852 = vmatprep.subr.mxu0 %v824
  %853 = vmatpush1.msra.mxu0 %v823
  %854 = vmatprep.subr.mxu0 %v808
  %855 = vmatpush1.msra.mxu0 %v807
  %856 = vmatprep.subr.mxu0 %v792
  %857 = vmatpush1.msra.mxu0 %v791
  %858 = vmatprep.subr.mxu0 %v776
  %859 = vmatpush1.msra.mxu0 %v775
  %860 = vmatprep.subr.mxu0 %v696
  %861 = vmatpush1.msra.mxu0 %v695
  %862 = vmatprep.subr.mxu0 %v760
  %863 = vmatpush1.msra.mxu0 %v759
  %864 = vmatprep.subr.mxu0 %v744
  %865 = vmatpush1.msra.mxu0 %v743
  %866 = vmatprep.subr.mxu0 %v728
  %867 = vmatpush1.msra.mxu0 %v727
  %868 = vmatprep.subr.mxu0 %v712
  %869 = vmatpush1.msra.mxu0 %v711
  %870 = vmatprep.subr.mxu0 0.0
  %871 = vmatpush2.msra.mxu0 0.0
  %872 = vmatprep.subr.mxu0 0.0
  %873 = vmatpush2.msra.mxu0 0.0
  %874 = vmatprep.subr.mxu0 0.0
  %875 = vmatpush2.msra.mxu0 0.0
  %876 = vmatprep.subr.mxu0 0.0
  %877 = vmatpush2.msra.mxu0 0.0
  %878 = vmatprep.subr.mxu0 0.0
  %879 = vmatpush2.msra.mxu0 0.0
  %880 = vmatprep.subr.mxu0 0.0
  %881 = vmatpush2.msra.mxu0 0.0
  %882 = vmatprep.subr.mxu0 0.0
  %883 = vmatpush2.msra.mxu0 0.0
  %884 = vmatprep.subr.mxu0 0.0
  %885 = vmatpush2.msra.mxu0 0.0
  %886 = vmatprep.subr.mxu0 0.0
  %887 = vmatpush2.msra.mxu0 0.0
  %888 = vmatprep.subr.mxu0 0.0
  %889 = vmatpush2.msra.mxu0 0.0
  %890 = vmatprep.subr.mxu0 0.0
  %891 = vmatpush2.msra.mxu0 0.0
  %892 = vmatprep.subr.mxu0 0.0
  %893 = vmatpush2.msra.mxu0 0.0
  %894 = vmatprep.subr.mxu0 0.0
  %895 = vmatpush2.msra.mxu0 0.0
  %896 = vmatprep.subr.mxu0 0.0
  %897 = vmatpush2.msra.mxu0 0.0
  %898 = vmatprep.subr.mxu0 0.0
  %899 = vmatpush2.msra.mxu0 0.0
  %900 = vmatprep.subr.mxu0 0.0
  %901 = vmatpush2.msra.mxu0 0.0
  %902 = vmatprep.mubr.f32.mxu0 0.0
  %903 = vmatmul.mubr.f32.gmra.mxu0 %v836
  %v904 = vpop.f32.mrf.mxu0
  %v905 = vadd.f32 %v832, %v904
  %v906 = vpop.f32.mrf.mxu0
  %v907 = vadd.f32 %v832, %v906
  %908 = vdwg.mxu0
  %909 = vmatprep.subr.mxu0 0.0
  %910 = vmatpush1.msra.mxu0 0.0
  %911 = vmatprep.subr.mxu0 0.0
  %912 = vmatpush1.msra.mxu0 0.0
  %913 = vmatprep.subr.mxu0 0.0
  %914 = vmatpush1.msra.mxu0 0.0
  %915 = vmatprep.subr.mxu0 0.0
  %916 = vmatpush1.msra.mxu0 0.0
  %917 = vmatprep.subr.mxu0 0.0
  %918 = vmatpush1.msra.mxu0 0.0
  %919 = vmatprep.subr.mxu0 0.0
  %920 = vmatpush1.msra.mxu0 0.0
  %921 = vmatprep.subr.mxu0 0.0
  %922 = vmatpush1.msra.mxu0 0.0
  %923 = vmatprep.subr.mxu0 %v826
  %924 = vmatpush1.msra.mxu0 %v825
  %925 = vmatprep.subr.mxu0 %v810
  %926 = vmatpush1.msra.mxu0 %v809
  %927 = vmatprep.subr.mxu0 %v794
  %928 = vmatpush1.msra.mxu0 %v793
  %929 = vmatprep.subr.mxu0 %v778
  %930 = vmatpush1.msra.mxu0 %v777
  %931 = vmatprep.subr.mxu0 %v698
  %932 = vmatpush1.msra.mxu0 %v697
  %933 = vmatprep.subr.mxu0 %v762
  %934 = vmatpush1.msra.mxu0 %v761
  %935 = vmatprep.subr.mxu0 %v746
  %936 = vmatpush1.msra.mxu0 %v745
  %937 = vmatprep.subr.mxu0 %v730
  %938 = vmatpush1.msra.mxu0 %v729
  %939 = vmatprep.subr.mxu0 %v714
  %940 = vmatpush1.msra.mxu0 %v713
  %941 = vmatprep.subr.mxu0 0.0
  %942 = vmatpush2.msra.mxu0 0.0
  %943 = vmatprep.subr.mxu0 0.0
  %944 = vmatpush2.msra.mxu0 0.0
  %945 = vmatprep.subr.mxu0 0.0
  %946 = vmatpush2.msra.mxu0 0.0
  %947 = vmatprep.subr.mxu0 0.0
  %948 = vmatpush2.msra.mxu0 0.0
  %949 = vmatprep.subr.mxu0 0.0
  %950 = vmatpush2.msra.mxu0 0.0
  %951 = vmatprep.subr.mxu0 0.0
  %952 = vmatpush2.msra.mxu0 0.0
  %953 = vmatprep.subr.mxu0 0.0
  %954 = vmatpush2.msra.mxu0 0.0
  %955 = vmatprep.subr.mxu0 0.0
  %956 = vmatpush2.msra.mxu0 0.0
  %957 = vmatprep.subr.mxu0 0.0
  %958 = vmatpush2.msra.mxu0 0.0
  %959 = vmatprep.subr.mxu0 0.0
  %960 = vmatpush2.msra.mxu0 0.0
  %961 = vmatprep.subr.mxu0 0.0
  %962 = vmatpush2.msra.mxu0 0.0
  %963 = vmatprep.subr.mxu0 0.0
  %964 = vmatpush2.msra.mxu0 0.0
  %965 = vmatprep.subr.mxu0 0.0
  %966 = vmatpush2.msra.mxu0 0.0
  %967 = vmatprep.subr.mxu0 0.0
  %968 = vmatpush2.msra.mxu0 0.0
  %969 = vmatprep.subr.mxu0 0.0
  %970 = vmatpush2.msra.mxu0 0.0
  %971 = vmatprep.subr.mxu0 0.0
  %972 = vmatpush2.msra.mxu0 0.0
  %973 = vmatprep.mubr.f32.mxu0 0.0
  %974 = vmatmul.mubr.f32.gmra.mxu0 %v836
  %v975 = vpop.f32.mrf.mxu0
  %v976 = vadd.f32 %v832, %v975
  %v977 = vpop.f32.mrf.mxu0
  %v978 = vadd.f32 %v832, %v977
  %979 = vdwg.mxu0
  %vm980 = vcmask 1043456
  %v981 = vsel %vm980, %v905, 0.0
  %v982 = vsel %vm980, %v907, 0.0
  %v983 = vadd.f32 %v981, %v982
  %v984 = vsel %vm980, %v976, 0.0
  %v985 = vadd.f32 %v983, %v984
  %v986 = vsel %vm980, %v978, 0.0
  %v987 = vadd.f32 %v985, %v986
  %988 = vadd.xlane.f32.xlu0 %v987
  %v989 = vpop.xlane.xlu0 %988
  %v990 = vmul.f32 %v905, %v905
  %v991 = vmul.f32 %v907, %v907
  %v992 = vmul.f32 %v976, %v976
  %v993 = vmul.f32 %v978, %v978
  %v994 = vsel %vm980, %v990, 0.0
  %v995 = vsel %vm980, %v991, 0.0
  %v996 = vadd.f32 %v994, %v995
  %v997 = vsel %vm980, %v992, 0.0
  %v998 = vadd.f32 %v996, %v997
  %v999 = vsel %vm980, %v993, 0.0
  %v1000 = vadd.f32 %v998, %v999
  %1001 = vadd.xlane.f32.xlu0 %v1000
  %v1002 = vpop.xlane.xlu0 %1001
  %v1003 = vmul.f32 %v989, 0.001953125
  %v1004 = vmul.f32 %v1002, 0.001953125
  %v1005 = vmul.f32 %v1003, %v1003
  %v1006 = vsub.f32 %v1004, %v1005
  %v1007 = vld [vmem:[%s8] sm:$0xf]
  %v1008 = vadd.f32 %v1006, 1e-05
  %v1009 = vrsqrt.pop %v1008
  %v1010 = vmul.f32 %v1007, %v1009
  %v1011 = vld [vmem:[%s9] sm:$0xf]
  %v1012 = vmul.f32 %v1003, %v1010
  %v1013 = vsub.f32 %v1011, %v1012
  %1015 = vset.pattern.permute.xlu0 0
  %1016 = vperm.xlu0 %1015, %v1010
  %v1017 = vpop.permute.xlu0 %1016
  %v1019 = vmul.f32 %v905, %v1017
  %v1020 = vmul.f32 %v907, %v1017
  %v1021 = vmul.f32 %v976, %v1017
  %v1022 = vmul.f32 %v978, %v1017
  %1024 = vset.pattern.permute.xlu0 0
  %1025 = vperm.xlu0 %1024, %v1013
  %v1026 = vpop.permute.xlu0 %1025
  %v1028 = vadd.f32 %v1019, %v1026
  %v1029 = vadd.f32 %v1020, %v1026
  %v1030 = vadd.f32 %v1021, %v1026
  %v1031 = vadd.f32 %v1022, %v1026
  %v1032 = vmax.f32 %v1028, 0.0
  %v1033 = vmax.f32 %v1029, 0.0
  %v1034 = vmax.f32 %v1030, 0.0
  %v1035 = vmax.f32 %v1031, 0.0
  %v1036 = vld [vmem:[%s10] sm:$0xf]
  %v1037 = vld [vmem:[%s11] sm:$0xf]
  %1039 = vset.pattern.permute.xlu0 0
  %1040 = vperm.xlu0 %1039, %v1037
  %v1041 = vpop.permute.xlu0 %1040
  %vm1043 = vcmask 31744
  %v1045 = vsel %vm1043, %v1036, 0
  %v1048 = vsel %vm980, %v1032, 0
  %v1051 = vsel %vm980, %v1033, 0
  %v1054 = vsel %vm980, %v1034, 0
  %v1057 = vsel %vm980, %v1035, 0
  %1059 = vmatprep.subr.mxu0 0.0
  %1060 = vmatpush1.msra.mxu0 0.0
  %1061 = vmatprep.subr.mxu0 0.0
  %1062 = vmatpush1.msra.mxu0 0.0
  %1063 = vmatprep.subr.mxu0 0.0
  %1064 = vmatpush1.msra.mxu0 0.0
  %1065 = vmatprep.subr.mxu0 0.0
  %1066 = vmatpush1.msra.mxu0 0.0
  %1067 = vmatprep.subr.mxu0 0.0
  %1068 = vmatpush1.msra.mxu0 0.0
  %1069 = vmatprep.subr.mxu0 0.0
  %1070 = vmatpush1.msra.mxu0 0.0
  %1071 = vmatprep.subr.mxu0 0.0
  %1072 = vmatpush1.msra.mxu0 0.0
  %1073 = vmatprep.subr.mxu0 0.0
  %1074 = vmatpush1.msra.mxu0 0.0
  %1075 = vmatprep.subr.mxu0 0.0
  %1076 = vmatpush1.msra.mxu0 0.0
  %1077 = vmatprep.subr.mxu0 0.0
  %1078 = vmatpush1.msra.mxu0 0.0
  %1079 = vmatprep.subr.mxu0 0.0
  %1080 = vmatpush1.msra.mxu0 0.0
  %1081 = vmatprep.subr.mxu0 0.0
  %1082 = vmatpush1.msra.mxu0 0.0
  %1083 = vmatprep.subr.mxu0 0.0
  %1084 = vmatpush1.msra.mxu0 0.0
  %1085 = vmatprep.subr.mxu0 0.0
  %1086 = vmatpush1.msra.mxu0 0.0
  %1087 = vmatprep.subr.mxu0 0.0
  %1088 = vmatpush1.msra.mxu0 0.0
  %1089 = vmatprep.subr.mxu0 %v1051
  %1090 = vmatpush1.msra.mxu0 %v1048
  %1091 = vmatprep.subr.mxu0 0.0
  %1092 = vmatpush2.msra.mxu0 0.0
  %1093 = vmatprep.subr.mxu0 0.0
  %1094 = vmatpush2.msra.mxu0 0.0
  %1095 = vmatprep.subr.mxu0 0.0
  %1096 = vmatpush2.msra.mxu0 0.0
  %1097 = vmatprep.subr.mxu0 0.0
  %1098 = vmatpush2.msra.mxu0 0.0
  %1099 = vmatprep.subr.mxu0 0.0
  %1100 = vmatpush2.msra.mxu0 0.0
  %1101 = vmatprep.subr.mxu0 0.0
  %1102 = vmatpush2.msra.mxu0 0.0
  %1103 = vmatprep.subr.mxu0 0.0
  %1104 = vmatpush2.msra.mxu0 0.0
  %1105 = vmatprep.subr.mxu0 0.0
  %1106 = vmatpush2.msra.mxu0 0.0
  %1107 = vmatprep.subr.mxu0 0.0
  %1108 = vmatpush2.msra.mxu0 0.0
  %1109 = vmatprep.subr.mxu0 0.0
  %1110 = vmatpush2.msra.mxu0 0.0
  %1111 = vmatprep.subr.mxu0 0.0
  %1112 = vmatpush2.msra.mxu0 0.0
  %1113 = vmatprep.subr.mxu0 0.0
  %1114 = vmatpush2.msra.mxu0 0.0
  %1115 = vmatprep.subr.mxu0 0.0
  %1116 = vmatpush2.msra.mxu0 0.0
  %1117 = vmatprep.subr.mxu0 0.0
  %1118 = vmatpush2.msra.mxu0 0.0
  %1119 = vmatprep.subr.mxu0 0.0
  %1120 = vmatpush2.msra.mxu0 0.0
  %1121 = vmatprep.subr.mxu0 0.0
  %1122 = vmatpush2.msra.mxu0 0.0
  %1123 = vmatprep.mubr.f32.mxu0 0.0
  %1124 = vmatmul.mubr.f32.gmra.mxu0 %v1045
  %v1125 = vpop.f32.mrf.mxu0
  %v1126 = vadd.f32 %v1041, %v1125
  %v1127 = vpop.f32.mrf.mxu0
  %v1128 = vadd.f32 %v1041, %v1127
  %1129 = vdwg.mxu0
  %1130 = vmatprep.subr.mxu0 0.0
  %1131 = vmatpush1.msra.mxu0 0.0
  %1132 = vmatprep.subr.mxu0 0.0
  %1133 = vmatpush1.msra.mxu0 0.0
  %1134 = vmatprep.subr.mxu0 0.0
  %1135 = vmatpush1.msra.mxu0 0.0
  %1136 = vmatprep.subr.mxu0 0.0
  %1137 = vmatpush1.msra.mxu0 0.0
  %1138 = vmatprep.subr.mxu0 0.0
  %1139 = vmatpush1.msra.mxu0 0.0
  %1140 = vmatprep.subr.mxu0 0.0
  %1141 = vmatpush1.msra.mxu0 0.0
  %1142 = vmatprep.subr.mxu0 0.0
  %1143 = vmatpush1.msra.mxu0 0.0
  %1144 = vmatprep.subr.mxu0 0.0
  %1145 = vmatpush1.msra.mxu0 0.0
  %1146 = vmatprep.subr.mxu0 0.0
  %1147 = vmatpush1.msra.mxu0 0.0
  %1148 = vmatprep.subr.mxu0 0.0
  %1149 = vmatpush1.msra.mxu0 0.0
  %1150 = vmatprep.subr.mxu0 0.0
  %1151 = vmatpush1.msra.mxu0 0.0
  %1152 = vmatprep.subr.mxu0 0.0
  %1153 = vmatpush1.msra.mxu0 0.0
  %1154 = vmatprep.subr.mxu0 0.0
  %1155 = vmatpush1.msra.mxu0 0.0
  %1156 = vmatprep.subr.mxu0 0.0
  %1157 = vmatpush1.msra.mxu0 0.0
  %1158 = vmatprep.subr.mxu0 0.0
  %1159 = vmatpush1.msra.mxu0 0.0
  %1160 = vmatprep.subr.mxu0 %v1057
  %1161 = vmatpush1.msra.mxu0 %v1054
  %1162 = vmatprep.subr.mxu0 0.0
  %1163 = vmatpush2.msra.mxu0 0.0
  %1164 = vmatprep.subr.mxu0 0.0
  %1165 = vmatpush2.msra.mxu0 0.0
  %1166 = vmatprep.subr.mxu0 0.0
  %1167 = vmatpush2.msra.mxu0 0.0
  %1168 = vmatprep.subr.mxu0 0.0
  %1169 = vmatpush2.msra.mxu0 0.0
  %1170 = vmatprep.subr.mxu0 0.0
  %1171 = vmatpush2.msra.mxu0 0.0
  %1172 = vmatprep.subr.mxu0 0.0
  %1173 = vmatpush2.msra.mxu0 0.0
  %1174 = vmatprep.subr.mxu0 0.0
  %1175 = vmatpush2.msra.mxu0 0.0
  %1176 = vmatprep.subr.mxu0 0.0
  %1177 = vmatpush2.msra.mxu0 0.0
  %1178 = vmatprep.subr.mxu0 0.0
  %1179 = vmatpush2.msra.mxu0 0.0
  %1180 = vmatprep.subr.mxu0 0.0
  %1181 = vmatpush2.msra.mxu0 0.0
  %1182 = vmatprep.subr.mxu0 0.0
  %1183 = vmatpush2.msra.mxu0 0.0
  %1184 = vmatprep.subr.mxu0 0.0
  %1185 = vmatpush2.msra.mxu0 0.0
  %1186 = vmatprep.subr.mxu0 0.0
  %1187 = vmatpush2.msra.mxu0 0.0
  %1188 = vmatprep.subr.mxu0 0.0
  %1189 = vmatpush2.msra.mxu0 0.0
  %1190 = vmatprep.subr.mxu0 0.0
  %1191 = vmatpush2.msra.mxu0 0.0
  %1192 = vmatprep.subr.mxu0 0.0
  %1193 = vmatpush2.msra.mxu0 0.0
  %1194 = vmatprep.mubr.f32.mxu0 0.0
  %1195 = vmatmul.mubr.f32.gmra.mxu0 %v1045
  %v1196 = vpop.f32.mrf.mxu0
  %v1197 = vadd.f32 %v1041, %v1196
  %v1198 = vpop.f32.mrf.mxu0
  %v1199 = vadd.f32 %v1041, %v1198
  %1200 = vdwg.mxu0
  %v1205 = vcombine.low %v1126, %v1128
  %v1206 = vcombine.low %v1197, %v1199
  %1209 = vst [vmem:[%s12] sm:$0xff] %v1205
  %1210 = vst [vmem:[%s12 + $0x8] sm:$0xff] %v1206
  // Predicated region
  $region50: #{optimized_head.1} parent=0 // pred_check
    _
  $region51: #{optimized_head.1} parent=0 // pred_check_branch
    %1212 = sbr.rel (0) target = $region53
  $region52: #{optimized_head.1} parent=0 // pred_region
    _
  $region53: #{optimized_head.1} parent=0 // pred_fallthru
    _
  // Predicated region
  $region54: #{optimized_head.1} parent=0 // pred_check
    _
  $region55: #{optimized_head.1} parent=0 // pred_check_branch
    %1214 = sbr.rel (0) target = $region57
  $region56: #{optimized_head.1} parent=0 // pred_region
    _
  $region57: #{optimized_head.1} parent=0 // pred_fallthru
    _

</llo_original>
